<compile_context>
chip_gen: v7x
topology: tpu7x:2x2x1
jax: 0.10.0
libtpu: 0.0.40
codegen_flags: <defaults>
</compile_context>

<pallas_src>
import jax
import jax.numpy as jnp
from jax import lax
from jax.experimental import pallas as pl
from jax.experimental.pallas import tpu as pltpu

HEADS = 5
IN_CH = 8          # in_channels
OUT_CH = 16        # out_channels
N_NODES = 16
N_EDGES = 40
BN_EPS = 1e-5

# Packed fused-projection slab layout: [IN_CH + 1 (bias row), 4 * 128 lanes]
#   lanes [  0,  80): q heads (head h at lanes h*16), pre-scaled by 1/sqrt(OUT_CH)
#   lanes [128, 208): k heads
#   lanes [256, 336): v heads, pre-scaled by 1/HEADS (head mean folded in)
#   lanes [384, 400): skip projection
Q_OFF = 0
K_OFF = 128
V_OFF = 256
S_OFF = 384
A_COLS = 512
B_ROWS = OUT_CH + 3        # wlin rows 0..15, blin, bn_scale, bn_shift


def graph_transformer_kernel(x_ref, ei_ref, wa_ref, wb_ref, out_ref):
    # x_ref:  [N, IN_CH]   node features
    # ei_ref: [2, E] int32 edge_index (row 0 = src, row 1 = dst)
    # wa_ref: [IN_CH+1, A_COLS] fused {Wq*scale | Wk | Wv/H | Wskip} + bias row
    # wb_ref: [B_ROWS, OUT_CH]  wlin / blin / folded-BN scale & shift
    x = x_ref[...]
    wa = wa_ref[...]
    wb = wb_ref[...]

    # ---- adjacency (edge multiplicity) built in-kernel from edge_index -------------
    # adj[i, j] = number of directed edges j -> i  (reproduces PyG duplicate-edge
    # semantics and masks non-edges in the softmax below).
    ei = ei_ref[...]                                                   # [2, E] int32
    node_iota = lax.broadcasted_iota(jnp.int32, (N_NODES, N_EDGES), 0)
    oh_dst = (node_iota == ei[1:2, :]).astype(jnp.float32)             # [N, E]
    oh_src = (node_iota == ei[0:1, :]).astype(jnp.float32)             # [N, E]
    adj = lax.dot_general(oh_dst, oh_src, (((1,), (1,)), ((), ())),
                          preferred_element_type=jnp.float32)          # [N, N]

    # ---- fused Q/K/V/skip projection (biases live in the last weight row) ----------
    proj = (jnp.dot(x, wa[:IN_CH, :], preferred_element_type=jnp.float32)
            + wa[IN_CH:IN_CH + 1, :])                                  # [N, A_COLS]

    q3 = jnp.stack([proj[:, Q_OFF + h * OUT_CH:Q_OFF + (h + 1) * OUT_CH]
                    for h in range(HEADS)])                            # [H, N, C]
    k3 = jnp.stack([proj[:, K_OFF + h * OUT_CH:K_OFF + (h + 1) * OUT_CH]
                    for h in range(HEADS)])                            # [H, N, C]
    v3 = jnp.stack([proj[:, V_OFF + h * OUT_CH:V_OFF + (h + 1) * OUT_CH]
                    for h in range(HEADS)])                            # [H, N, C] (already /HEADS)
    skip = proj[:, S_OFF:S_OFF + OUT_CH]                               # [N, C]

    # ---- per-destination softmax over incoming edges, all heads batched ------------
    # (1/sqrt(C) folded into Wq; bk dropped -- constant over sources, cancels.)
    s = jnp.einsum('hic,hjc->hij', q3, k3,
                   preferred_element_type=jnp.float32)                 # [H, N, N]
    adj3 = jnp.broadcast_to(adj[None, :, :], (HEADS, N_NODES, N_NODES))
    masked = jnp.where(adj3 > 0.0, s, -1e30)       # max over real edges only
    m = jnp.max(masked, axis=-1, keepdims=True)    # rows w/o edges: m = -1e30 -> exp(0)*0 = 0
    p = jnp.exp(masked - m) * adj3                 # multiplicity-weighted, <= adj
    denom = jnp.sum(p, axis=-1, keepdims=True)
    alpha = p * pl.reciprocal(jnp.maximum(denom, 1e-30), approx=True)
    # TODO(synk): training-mode dropout(p=0.6) on alpha omitted (eval-mode forward).

    ctx = jnp.einsum('hij,hjc->hic', alpha, v3,
                     preferred_element_type=jnp.float32)               # [H, N, C]
    out = jnp.sum(ctx, axis=0) + skip              # head mean already folded into Wv/bv

    # ---- lin1 + ReLU + BatchNorm1d (eval) folded to one scale & shift --------------
    y = (jnp.dot(out, wb[:OUT_CH, :], preferred_element_type=jnp.float32)
         + wb[OUT_CH:OUT_CH + 1, :])
    y = jnp.maximum(y, 0.0)
    out_ref[...] = y * wb[OUT_CH + 1:OUT_CH + 2, :] + wb[OUT_CH + 2:OUT_CH + 3, :]


def pack_params(raw_params):
    """Fold constants and pack all 14 parameters into two small lane-aligned slabs."""
    (wq, bq, wk, bk, wv, bv, wskip, bskip,
     wlin, blin, gamma, beta, rmean, rvar) = raw_params
    del bk  # constant over source nodes -> cancels in the per-destination softmax

    qscale = 1.0 / float(OUT_CH) ** 0.5
    vscale = 1.0 / float(HEADS)          # concat=False -> mean over heads

    wa = jnp.zeros((IN_CH + 1, A_COLS), jnp.float32)
    for h in range(HEADS):
        cq = Q_OFF + h * OUT_CH
        ck = K_OFF + h * OUT_CH
        cv = V_OFF + h * OUT_CH
        wa = wa.at[:IN_CH, cq:cq + OUT_CH].set(wq[:, h * OUT_CH:(h + 1) * OUT_CH] * qscale)
        wa = wa.at[IN_CH, cq:cq + OUT_CH].set(bq[0, h * OUT_CH:(h + 1) * OUT_CH] * qscale)
        wa = wa.at[:IN_CH, ck:ck + OUT_CH].set(wk[:, h * OUT_CH:(h + 1) * OUT_CH])
        wa = wa.at[:IN_CH, cv:cv + OUT_CH].set(wv[:, h * OUT_CH:(h + 1) * OUT_CH] * vscale)
        wa = wa.at[IN_CH, cv:cv + OUT_CH].set(bv[0, h * OUT_CH:(h + 1) * OUT_CH] * vscale)
    wa = wa.at[:IN_CH, S_OFF:S_OFF + OUT_CH].set(wskip)
    wa = wa.at[IN_CH, S_OFF:S_OFF + OUT_CH].set(bskip[0])

    bn_scale = gamma * jax.lax.rsqrt(rvar + jnp.float32(BN_EPS))
    bn_shift = beta - rmean * bn_scale

    wb = jnp.zeros((B_ROWS, OUT_CH), jnp.float32)
    wb = wb.at[:OUT_CH, :].set(wlin)
    wb = wb.at[OUT_CH, :].set(blin[0])
    wb = wb.at[OUT_CH + 1, :].set(bn_scale[0])
    wb = wb.at[OUT_CH + 2, :].set(bn_shift[0])
    return wa, wb


@jax.jit
def graph_transformer(x, edge_index, edge_attr, packed_params):
    # edge_attr accepted for signature parity with the PyTorch module (unused by forward).
    del edge_attr
    wa, wb = packed_params
    vmem = pl.BlockSpec(memory_space=pltpu.MemorySpace.VMEM)
    # Everything (adjacency build, bias handling, final slice) happens inside the
    # kernel, so this jit lowers to exactly one pallas_call.
    return pl.pallas_call(
        graph_transformer_kernel,
        out_shape=jax.ShapeDtypeStruct((N_NODES, OUT_CH), jnp.float32),
        in_specs=[vmem, vmem, vmem, vmem],
        out_specs=vmem,
    )(x, edge_index, wa, wb)


def init_params(key):
    ks = jax.random.split(key, 8)
    scale = 0.1

    def lin(k, fin, fout):
        kw, kb = jax.random.split(k)
        w = scale * jax.random.normal(kw, (fin, fout), jnp.float32)
        b = scale * jax.random.normal(kb, (1, fout), jnp.float32)
        return w, b

    wq, bq = lin(ks[0], IN_CH, HEADS * OUT_CH)      # lin_query
    wk, bk = lin(ks[1], IN_CH, HEADS * OUT_CH)      # lin_key
    wv, bv = lin(ks[2], IN_CH, HEADS * OUT_CH)      # lin_value
    wskip, bskip = lin(ks[3], IN_CH, OUT_CH)        # lin_skip (root_weight)
    wlin, blin = lin(ks[4], OUT_CH, OUT_CH)         # self.lin1

    # BatchNorm1d(out_channels): weight=1, bias=0, running_mean=0, running_var=1
    gamma = jnp.ones((1, OUT_CH), jnp.float32)
    beta = jnp.zeros((1, OUT_CH), jnp.float32)
    rmean = jnp.zeros((1, OUT_CH), jnp.float32)
    rvar = jnp.ones((1, OUT_CH), jnp.float32)

    return (wq, bq, wk, bk, wv, bv, wskip, bskip,
            wlin, blin, gamma, beta, rmean, rvar)


if __name__ == "__main__":
    key = jax.random.PRNGKey(0)
    k_x, k_src, k_dst, k_ea, k_p = jax.random.split(key, 5)

    x = jax.random.normal(k_x, (N_NODES, IN_CH), jnp.float32)
    src = jax.random.randint(k_src, (N_EDGES,), 0, N_NODES, jnp.int32)
    dst = jax.random.randint(k_dst, (N_EDGES,), 0, N_NODES, jnp.int32)
    edge_index = jnp.stack([src, dst], axis=0)                       # [2, E] int32
    edge_attr = jax.random.normal(k_ea, (N_EDGES, 4), jnp.float32)   # unused by forward

    raw_params = init_params(k_p)
    packed_params = pack_params(raw_params)                          # one-time packing

    out = graph_transformer(x, edge_index, edge_attr, packed_params)
    out = jax.block_until_ready(out)

    assert out.shape == (N_NODES, OUT_CH)
    assert bool(jnp.all(jnp.isfinite(out)))
    print("KERNEL_OK")
</pallas_src>

<mosaic_0001>
module attributes {stable_mosaic.version = 11 : i64} {
  func.func @graph_transformer_kernel(%arg0: memref<16x8xf32, #tpu.memory_space<vmem>>, %arg1: memref<2x40xi32, #tpu.memory_space<vmem>>, %arg2: memref<9x512xf32, #tpu.memory_space<vmem>>, %arg3: memref<19x16xf32, #tpu.memory_space<vmem>>, %arg4: memref<16x16xf32, #tpu.memory_space<vmem>>) attributes {dimension_semantics = [], scalar_prefetch = 0 : i64, scratch_operands = 0 : i64, tpu.core_type = #tpu.core_type<tc>} {
    %c0 = arith.constant 0 : index
    %c0_0 = arith.constant 0 : index
    %0 = vector.load %arg0[%c0, %c0_0] : memref<16x8xf32, #tpu.memory_space<vmem>>, vector<16x8xf32>
    %c0_1 = arith.constant 0 : index
    %c0_2 = arith.constant 0 : index
    %1 = vector.load %arg2[%c0_1, %c0_2] : memref<9x512xf32, #tpu.memory_space<vmem>>, vector<9x512xf32>
    %c0_3 = arith.constant 0 : index
    %c0_4 = arith.constant 0 : index
    %2 = vector.load %arg3[%c0_3, %c0_4] : memref<19x16xf32, #tpu.memory_space<vmem>>, vector<19x16xf32>
    %c0_5 = arith.constant 0 : index
    %c0_6 = arith.constant 0 : index
    %3 = vector.load %arg1[%c0_5, %c0_6] : memref<2x40xi32, #tpu.memory_space<vmem>>, vector<2x40xi32>
    %4 = tpu.iota {dimensions = array<i32: 0>} : vector<16x40xi32>
    %5 = vector.extract_strided_slice %3 {offsets = [1, 0], sizes = [1, 40], strides = [1, 1]} : vector<2x40xi32> to vector<1x40xi32>
    %6 = vector.broadcast %5 : vector<1x40xi32> to vector<16x40xi32>
    %7 = arith.cmpi eq, %4, %6 : vector<16x40xi32>
    %8 = arith.extui %7 : vector<16x40xi1> to vector<16x40xi32>
    %9 = arith.sitofp %8 : vector<16x40xi32> to vector<16x40xf32>
    %10 = vector.extract_strided_slice %3 {offsets = [0, 0], sizes = [1, 40], strides = [1, 1]} : vector<2x40xi32> to vector<1x40xi32>
    %11 = vector.broadcast %10 : vector<1x40xi32> to vector<16x40xi32>
    %12 = arith.cmpi eq, %4, %11 : vector<16x40xi32>
    %13 = arith.extui %12 : vector<16x40xi1> to vector<16x40xi32>
    %14 = arith.sitofp %13 : vector<16x40xi32> to vector<16x40xf32>
    %cst = arith.constant dense<0.000000e+00> : vector<16x16xf32>
    %15 = tpu.matmul %9, %14, %cst {dimension_numbers = #tpu.dot_dimension_numbers<[1], [1], [0], [0], [0, 0, 1, 0], [], []>} : vector<16x40xf32>, vector<16x40xf32>, vector<16x16xf32> -> vector<16x16xf32>
    %16 = vector.extract_strided_slice %1 {offsets = [0, 0], sizes = [8, 512], strides = [1, 1]} : vector<9x512xf32> to vector<8x512xf32>
    %cst_7 = arith.constant dense<0.000000e+00> : vector<16x512xf32>
    %17 = tpu.matmul %0, %16, %cst_7 {dimension_numbers = #tpu.dot_dimension_numbers<[1], [0], [0], [1], [0, 0, 1, 1], [], []>} : vector<16x8xf32>, vector<8x512xf32>, vector<16x512xf32> -> vector<16x512xf32>
    %18 = vector.extract_strided_slice %1 {offsets = [8, 0], sizes = [1, 512], strides = [1, 1]} : vector<9x512xf32> to vector<1x512xf32>
    %19 = vector.broadcast %18 : vector<1x512xf32> to vector<16x512xf32>
    %20 = arith.addf %17, %19 : vector<16x512xf32>
    %21 = vector.extract_strided_slice %20 {offsets = [0, 0], sizes = [16, 16], strides = [1, 1]} : vector<16x512xf32> to vector<16x16xf32>
    %22 = vector.extract_strided_slice %20 {offsets = [0, 16], sizes = [16, 16], strides = [1, 1]} : vector<16x512xf32> to vector<16x16xf32>
    %23 = vector.extract_strided_slice %20 {offsets = [0, 32], sizes = [16, 16], strides = [1, 1]} : vector<16x512xf32> to vector<16x16xf32>
    %24 = vector.extract_strided_slice %20 {offsets = [0, 48], sizes = [16, 16], strides = [1, 1]} : vector<16x512xf32> to vector<16x16xf32>
    %25 = vector.extract_strided_slice %20 {offsets = [0, 64], sizes = [16, 16], strides = [1, 1]} : vector<16x512xf32> to vector<16x16xf32>
    %26 = vector.shape_cast %21 : vector<16x16xf32> to vector<1x16x16xf32>
    %27 = vector.shape_cast %22 : vector<16x16xf32> to vector<1x16x16xf32>
    %28 = vector.shape_cast %23 : vector<16x16xf32> to vector<1x16x16xf32>
    %29 = vector.shape_cast %24 : vector<16x16xf32> to vector<1x16x16xf32>
    %30 = vector.shape_cast %25 : vector<16x16xf32> to vector<1x16x16xf32>
    %31 = tpu.concatenate %26, %27, %28, %29, %30 in 0 : vector<1x16x16xf32>, vector<1x16x16xf32>, vector<1x16x16xf32>, vector<1x16x16xf32>, vector<1x16x16xf32> -> vector<5x16x16xf32>
    %32 = vector.extract_strided_slice %20 {offsets = [0, 128], sizes = [16, 16], strides = [1, 1]} : vector<16x512xf32> to vector<16x16xf32>
    %33 = vector.extract_strided_slice %20 {offsets = [0, 144], sizes = [16, 16], strides = [1, 1]} : vector<16x512xf32> to vector<16x16xf32>
    %34 = vector.extract_strided_slice %20 {offsets = [0, 160], sizes = [16, 16], strides = [1, 1]} : vector<16x512xf32> to vector<16x16xf32>
    %35 = vector.extract_strided_slice %20 {offsets = [0, 176], sizes = [16, 16], strides = [1, 1]} : vector<16x512xf32> to vector<16x16xf32>
    %36 = vector.extract_strided_slice %20 {offsets = [0, 192], sizes = [16, 16], strides = [1, 1]} : vector<16x512xf32> to vector<16x16xf32>
    %37 = vector.shape_cast %32 : vector<16x16xf32> to vector<1x16x16xf32>
    %38 = vector.shape_cast %33 : vector<16x16xf32> to vector<1x16x16xf32>
    %39 = vector.shape_cast %34 : vector<16x16xf32> to vector<1x16x16xf32>
    %40 = vector.shape_cast %35 : vector<16x16xf32> to vector<1x16x16xf32>
    %41 = vector.shape_cast %36 : vector<16x16xf32> to vector<1x16x16xf32>
    %42 = tpu.concatenate %37, %38, %39, %40, %41 in 0 : vector<1x16x16xf32>, vector<1x16x16xf32>, vector<1x16x16xf32>, vector<1x16x16xf32>, vector<1x16x16xf32> -> vector<5x16x16xf32>
    %43 = vector.extract_strided_slice %20 {offsets = [0, 256], sizes = [16, 16], strides = [1, 1]} : vector<16x512xf32> to vector<16x16xf32>
    %44 = vector.extract_strided_slice %20 {offsets = [0, 272], sizes = [16, 16], strides = [1, 1]} : vector<16x512xf32> to vector<16x16xf32>
    %45 = vector.extract_strided_slice %20 {offsets = [0, 288], sizes = [16, 16], strides = [1, 1]} : vector<16x512xf32> to vector<16x16xf32>
    %46 = vector.extract_strided_slice %20 {offsets = [0, 304], sizes = [16, 16], strides = [1, 1]} : vector<16x512xf32> to vector<16x16xf32>
    %47 = vector.extract_strided_slice %20 {offsets = [0, 320], sizes = [16, 16], strides = [1, 1]} : vector<16x512xf32> to vector<16x16xf32>
    %48 = vector.shape_cast %43 : vector<16x16xf32> to vector<1x16x16xf32>
    %49 = vector.shape_cast %44 : vector<16x16xf32> to vector<1x16x16xf32>
    %50 = vector.shape_cast %45 : vector<16x16xf32> to vector<1x16x16xf32>
    %51 = vector.shape_cast %46 : vector<16x16xf32> to vector<1x16x16xf32>
    %52 = vector.shape_cast %47 : vector<16x16xf32> to vector<1x16x16xf32>
    %53 = tpu.concatenate %48, %49, %50, %51, %52 in 0 : vector<1x16x16xf32>, vector<1x16x16xf32>, vector<1x16x16xf32>, vector<1x16x16xf32>, vector<1x16x16xf32> -> vector<5x16x16xf32>
    %54 = vector.extract_strided_slice %20 {offsets = [0, 384], sizes = [16, 16], strides = [1, 1]} : vector<16x512xf32> to vector<16x16xf32>
    "tpu.trace_start"() <{level = 10 : i32, message = "hic,hjc->hij"}> : () -> ()
    %cst_8 = arith.constant dense<0.000000e+00> : vector<5x16x16xf32>
    %55 = tpu.matmul %31, %42, %cst_8 {dimension_numbers = #tpu.dot_dimension_numbers<[2], [2], [1], [1], [0, 0, 0, 1, 1, 1], [0], [0]>} : vector<5x16x16xf32>, vector<5x16x16xf32>, vector<5x16x16xf32> -> vector<5x16x16xf32>
    "tpu.trace_stop"() : () -> ()
    %56 = vector.shape_cast %15 : vector<16x16xf32> to vector<1x16x16xf32>
    %57 = vector.shape_cast %56 : vector<1x16x16xf32> to vector<1x16x16xf32>
    %58 = vector.broadcast %57 : vector<1x16x16xf32> to vector<5x16x16xf32>
    %cst_9 = arith.constant 0.000000e+00 : f32
    %59 = vector.broadcast %cst_9 : f32 to vector<5x16x16xf32>
    %60 = arith.cmpf ogt, %58, %59 : vector<5x16x16xf32>
    %cst_10 = arith.constant -1.000000e+30 : f32
    %61 = vector.broadcast %cst_10 : f32 to vector<5x16x16xf32>
    %62 = arith.select %60, %55, %61 : vector<5x16x16xi1>, vector<5x16x16xf32>
    %cst_11 = arith.constant dense<0xFF800000> : vector<5x16xf32>
    %63 = vector.multi_reduction <maximumf>, %62, %cst_11 [2] : vector<5x16x16xf32> to vector<5x16xf32>
    %64 = vector.shape_cast %63 : vector<5x16xf32> to vector<5x16x1xf32>
    %65 = vector.broadcast %64 : vector<5x16x1xf32> to vector<5x16x16xf32>
    %66 = arith.subf %62, %65 : vector<5x16x16xf32>
    %67 = math.exp %66 : vector<5x16x16xf32>
    %68 = arith.mulf %67, %58 : vector<5x16x16xf32>
    %cst_12 = arith.constant dense<0.000000e+00> : vector<5x16xf32>
    %69 = vector.multi_reduction <add>, %68, %cst_12 [2] : vector<5x16x16xf32> to vector<5x16xf32>
    %70 = vector.shape_cast %69 : vector<5x16xf32> to vector<5x16x1xf32>
    %cst_13 = arith.constant 1.000000e-30 : f32
    %71 = vector.broadcast %cst_13 : f32 to vector<5x16x1xf32>
    %72 = arith.maximumf %70, %71 : vector<5x16x1xf32>
    %73 = tpu.reciprocal %72 {approx = true} : vector<5x16x1xf32> -> vector<5x16x1xf32>
    %74 = vector.broadcast %73 : vector<5x16x1xf32> to vector<5x16x16xf32>
    %75 = arith.mulf %68, %74 : vector<5x16x16xf32>
    "tpu.trace_start"() <{level = 10 : i32, message = "hij,hjc->hic"}> : () -> ()
    %cst_14 = arith.constant dense<0.000000e+00> : vector<5x16x16xf32>
    %76 = tpu.matmul %75, %53, %cst_14 {dimension_numbers = #tpu.dot_dimension_numbers<[2], [1], [1], [2], [0, 0, 0, 1, 1, 2], [0], [0]>} : vector<5x16x16xf32>, vector<5x16x16xf32>, vector<5x16x16xf32> -> vector<5x16x16xf32>
    "tpu.trace_stop"() : () -> ()
    %cst_15 = arith.constant dense<0.000000e+00> : vector<16x16xf32>
    %77 = vector.multi_reduction <add>, %76, %cst_15 [0] : vector<5x16x16xf32> to vector<16x16xf32>
    %78 = arith.addf %77, %54 : vector<16x16xf32>
    %79 = vector.extract_strided_slice %2 {offsets = [0, 0], sizes = [16, 16], strides = [1, 1]} : vector<19x16xf32> to vector<16x16xf32>
    %cst_16 = arith.constant dense<0.000000e+00> : vector<16x16xf32>
    %80 = tpu.matmul %78, %79, %cst_16 {dimension_numbers = #tpu.dot_dimension_numbers<[1], [0], [0], [1], [0, 0, 1, 1], [], []>} : vector<16x16xf32>, vector<16x16xf32>, vector<16x16xf32> -> vector<16x16xf32>
    %81 = vector.extract_strided_slice %2 {offsets = [16, 0], sizes = [1, 16], strides = [1, 1]} : vector<19x16xf32> to vector<1x16xf32>
    %82 = vector.broadcast %81 : vector<1x16xf32> to vector<16x16xf32>
    %83 = arith.addf %80, %82 : vector<16x16xf32>
    %cst_17 = arith.constant 0.000000e+00 : f32
    %84 = vector.broadcast %cst_17 : f32 to vector<16x16xf32>
    %85 = arith.maximumf %83, %84 : vector<16x16xf32>
    %86 = vector.extract_strided_slice %2 {offsets = [17, 0], sizes = [1, 16], strides = [1, 1]} : vector<19x16xf32> to vector<1x16xf32>
    %87 = vector.broadcast %86 : vector<1x16xf32> to vector<16x16xf32>
    %88 = arith.mulf %85, %87 : vector<16x16xf32>
    %89 = vector.extract_strided_slice %2 {offsets = [18, 0], sizes = [1, 16], strides = [1, 1]} : vector<19x16xf32> to vector<1x16xf32>
    %90 = vector.broadcast %89 : vector<1x16xf32> to vector<16x16xf32>
    %91 = arith.addf %88, %90 : vector<16x16xf32>
    %c0_18 = arith.constant 0 : index
    %c0_19 = arith.constant 0 : index
    %92 = vector.load %arg4[%c0_18, %c0_19] : memref<16x16xf32, #tpu.memory_space<vmem>>, vector<16x16xf32>
    tpu.vector_store %arg4[%c0_18, %c0_19], %91 {strides = array<i32>} : memref<16x16xf32, #tpu.memory_space<vmem>>, vector<16x16xf32>,
    return
  }
}

</mosaic_0001>

<llo_original>
// kernel: graph_transformer.1
$region0: #{graph_transformer.1}
  #allocation0 [shape = 'u32[]', space=smem, size = 0x4, offset = 0x4, fixed_abs, tag = 'smem constant byte address 0x4 - core index']
  #allocation1 [shape = 'u32[144,128]{1,0:T(1,128)}', space=vmem, size = 0x12000, scoped, tag = 'internal scratch']
  %s0 = inlined_call_operand.vmem [shape: f32[16,8], index: 0, kind: input, shape index: {}]
  %s1 = inlined_call_operand.vmem [shape: s32[2,40], index: 1, kind: input, shape index: {}]
  %s2 = inlined_call_operand.vmem [shape: f32[9,512], index: 2, kind: input, shape index: {}]
  %s3 = inlined_call_operand.vmem [shape: f32[19,16], index: 3, kind: input, shape index: {}]
  %s4 = inlined_call_operand.hbm [shape: f32[16,16], index: 4, kind: output, shape index: {}]
  %s5 = sld [smem:[#allocation0]]
  $region26: #{graph_transformer.1} parent=0
    _
  %s7 = ssub.s32 1, %s5
  %s8 = scalar_select 0, %s7, %s5
  $region1: #{graph_transformer.1} parent=0
    #allocation2 [shape = 'u8[8192]{0}', space=vmem, size = 0x2000, scoped, tag = 'output window, operand 0, single buffered']
    #allocation3 [shape = 's32[1]{0}', space=sflag, size = 0x4, scoped, tag = 'scoped memory for graph_transformer.1']
    %9 = vsyncpa [#allocation3], 0
    // Predicated region
    $region2: #{graph_transformer.1} parent=1 // pred_check
      _
    $region3: #{graph_transformer.1} parent=1 // pred_check_branch
      %11 = sbr.rel (0) target = $region5
    $region4: #{graph_transformer.1} parent=1 // pred_region
      _
    $region5: #{graph_transformer.1} parent=1 // pred_fallthru
      _
    // Predicated region
    $region6: #{graph_transformer.1} parent=1 // pred_check
      _
    $region7: #{graph_transformer.1} parent=1 // pred_check_branch
      %13 = sbr.rel (0) target = $region9
    $region8: #{graph_transformer.1} parent=1 // pred_region
      _
    $region9: #{graph_transformer.1} parent=1 // pred_fallthru
      _
    // Predicated region
    $region10: #{graph_transformer.1} parent=1 // pred_check
      _
    $region11: #{graph_transformer.1} parent=1 // pred_check_branch
      %15 = sbr.rel (0) target = $region13
    $region12: #{graph_transformer.1} parent=1 // pred_region
      _
    $region13: #{graph_transformer.1} parent=1 // pred_fallthru
      _
    // Predicated region
    $region14: #{graph_transformer.1} parent=1 // pred_check
      _
    $region15: #{graph_transformer.1} parent=1 // pred_check_branch
      %17 = sbr.rel (0) target = $region17
    $region16: #{graph_transformer.1} parent=1 // pred_region
      _
    $region17: #{graph_transformer.1} parent=1 // pred_fallthru
      _
    %v18 = vld [vmem:[%s0] sm:$0xff]
    %v19 = vld [vmem:[%s0 + $0x8] sm:$0xff]
    %v20 = vld [vmem:[%s2] sm:$0xff]
    %v21 = vld [vmem:[%s2 + $0x8] sm:$0xff]
    %v22 = vld [vmem:[%s2 + $0x10] sm:$0xff]
    %v23 = vld [vmem:[%s2 + $0x18] sm:$0xff]
    %v24 = vld [vmem:[%s2 + $0x20] sm:$0x1]
    %v25 = vld [vmem:[%s2 + $0x28] sm:$0x1]
    %v26 = vld [vmem:[%s2 + $0x30] sm:$0x1]
    %v27 = vld [vmem:[%s2 + $0x38] sm:$0x1]
    %v28 = vld [vmem:[%s3] sm:$0xff]
    %v29 = vld [vmem:[%s3 + $0x8] sm:$0xff]
    %v30 = vld [vmem:[%s3 + $0x10] sm:$0x7]
    %v31 = vld [vmem:[%s1] sm:$0x3]
    %v32 = vlaneseq
    %v33 = vshrl.u32 %v32, 7
    %v34 = vadd.s32 %v33, 8
    %v35 = vlaneseq
    %v36 = vshrl.u32 %v35, 7
    %v37 = vsub.s32 1, %v36
    %v38 = vrot.slane %v31, %v37
    %vm39 = vcmp.eq.s32.totalorder %v33, %v38
    %vm40 = vcmp.eq.s32.totalorder %v34, %v38
    %v41 = vsel %vm39, 1, 0
    %v42 = vsel %vm40, 1, 0
    %v43 = vcvt.s32.f32 %v41
    %v44 = vcvt.s32.f32 %v42
    %v45 = vlaneseq
    %v46 = vshrl.u32 %v45, 7
    %v47 = vsub.s32 0, %v46
    %v48 = vrot.slane %v31, %v47
    %vm49 = vcmp.eq.s32.totalorder %v33, %v48
    %vm50 = vcmp.eq.s32.totalorder %v34, %v48
    %v51 = vsel %vm49, 1, 0
    %v52 = vsel %vm50, 1, 0
    %v53 = vcvt.s32.f32 %v51
    %v54 = vcvt.s32.f32 %v52
    %vm55 = vcmask 326656
    %v57 = vsel %vm55, %v43, 0
    %v60 = vsel %vm55, %v44, 0
    %v63 = vsel %vm55, %v53, 0
    %v66 = vsel %vm55, %v54, 0
    %68 = vmatprep.subr.mxu0 0.0
    %69 = vmatpush1.xpose.msra.mxu0 %v63
    %70 = vmatprep.subr.mxu0 0.0
    %71 = vmatpush1.xpose.msra.mxu0 %v66
    %72 = vmatprep.subr.mxu0 0.0
    %73 = vmatpush1.xpose.msra.mxu0 0.0
    %74 = vmatprep.subr.mxu0 0.0
    %75 = vmatpush1.xpose.msra.mxu0 0.0
    %76 = vmatprep.subr.mxu0 0.0
    %77 = vmatpush1.xpose.msra.mxu0 0.0
    %78 = vmatprep.subr.mxu0 0.0
    %79 = vmatpush1.xpose.msra.mxu0 0.0
    %80 = vmatprep.subr.mxu0 0.0
    %81 = vmatpush1.xpose.msra.mxu0 0.0
    %82 = vmatprep.subr.mxu0 0.0
    %83 = vmatpush1.xpose.msra.mxu0 0.0
    %84 = vmatprep.subr.mxu0 0.0
    %85 = vmatpush1.xpose.msra.mxu0 0.0
    %86 = vmatprep.subr.mxu0 0.0
    %87 = vmatpush1.xpose.msra.mxu0 0.0
    %88 = vmatprep.subr.mxu0 0.0
    %89 = vmatpush1.xpose.msra.mxu0 0.0
    %90 = vmatprep.subr.mxu0 0.0
    %91 = vmatpush1.xpose.msra.mxu0 0.0
    %92 = vmatprep.subr.mxu0 0.0
    %93 = vmatpush1.xpose.msra.mxu0 0.0
    %94 = vmatprep.subr.mxu0 0.0
    %95 = vmatpush1.xpose.msra.mxu0 0.0
    %96 = vmatprep.subr.mxu0 0.0
    %97 = vmatpush1.xpose.msra.mxu0 0.0
    %98 = vmatprep.subr.mxu0 0.0
    %99 = vmatpush1.xpose.msra.mxu0 0.0
    %100 = vmatprep.subr.mxu0 0.0
    %101 = vmatpush1.xpose.msra.mxu0 0.0
    %102 = vmatprep.subr.mxu0 0.0
    %103 = vmatpush1.xpose.msra.mxu0 0.0
    %104 = vmatprep.subr.mxu0 0.0
    %105 = vmatpush1.xpose.msra.mxu0 0.0
    %106 = vmatprep.subr.mxu0 0.0
    %107 = vmatpush1.xpose.msra.mxu0 0.0
    %108 = vmatprep.subr.mxu0 0.0
    %109 = vmatpush1.xpose.msra.mxu0 0.0
    %110 = vmatprep.subr.mxu0 0.0
    %111 = vmatpush1.xpose.msra.mxu0 0.0
    %112 = vmatprep.subr.mxu0 0.0
    %113 = vmatpush1.xpose.msra.mxu0 0.0
    %114 = vmatprep.subr.mxu0 0.0
    %115 = vmatpush1.xpose.msra.mxu0 0.0
    %116 = vmatprep.subr.mxu0 0.0
    %117 = vmatpush1.xpose.msra.mxu0 0.0
    %118 = vmatprep.subr.mxu0 0.0
    %119 = vmatpush1.xpose.msra.mxu0 0.0
    %120 = vmatprep.subr.mxu0 0.0
    %121 = vmatpush1.xpose.msra.mxu0 0.0
    %122 = vmatprep.subr.mxu0 0.0
    %123 = vmatpush1.xpose.msra.mxu0 0.0
    %124 = vmatprep.subr.mxu0 0.0
    %125 = vmatpush1.xpose.msra.mxu0 0.0
    %126 = vmatprep.subr.mxu0 0.0
    %127 = vmatpush1.xpose.msra.mxu0 0.0
    %128 = vmatprep.subr.mxu0 0.0
    %129 = vmatpush1.xpose.msra.mxu0 0.0
    %130 = vmatprep.subr.mxu0 0.0
    %131 = vmatpush1.xpose.msra.mxu0 0.0
    %132 = vmatprep.mubr.f32.mxu0 0.0
    %133 = vmatmul.mubr.f32.gmra.mrb[0].mxu0 %v57
    %v134 = vpop.f32.mrb[0].mxu0
    %v135 = vadd.f32 0.0, %v134
    %v136 = vpop.f32.mrb[0].mxu0
    %137 = vmatprep.mubr.f32.mxu0 0.0
    %138 = vmatmul.mubr.f32.gmra.mrb[0].mxu0 %v60
    %v139 = vpop.f32.mrb[0].mxu0
    %v140 = vadd.f32 0.0, %v139
    %v141 = vpop.f32.mrb[0].mxu0
    %142 = vdwg.mxu0
    %v143 = vlaneseq
    %v144 = vshrl.u32 %v143, 7
    %v145 = vsub.s32 0, %v144
    %v146 = vrot.slane %v24, %v145
    %v147 = vlaneseq
    %v148 = vshrl.u32 %v147, 7
    %v149 = vsub.s32 0, %v148
    %v150 = vrot.slane %v25, %v149
    %v151 = vlaneseq
    %v152 = vshrl.u32 %v151, 7
    %v153 = vsub.s32 0, %v152
    %v154 = vrot.slane %v26, %v153
    %v155 = vlaneseq
    %v156 = vshrl.u32 %v155, 7
    %v157 = vsub.s32 0, %v156
    %v158 = vrot.slane %v27, %v157
    %vm159 = vcmask 64512
    %v161 = vsel %vm159, %v18, 0
    %v164 = vsel %vm159, %v19, 0
    %166 = vmatprep.subr.mxu0 %v21
    %167 = vmatpush1.msra.mxu0 %v20
    %168 = vmatprep.subr.mxu0 0.0
    %169 = vmatpush1.msra.mxu0 0.0
    %170 = vmatprep.subr.mxu0 0.0
    %171 = vmatpush1.msra.mxu0 0.0
    %172 = vmatprep.subr.mxu0 0.0
    %173 = vmatpush1.msra.mxu0 0.0
    %174 = vmatprep.subr.mxu0 0.0
    %175 = vmatpush1.msra.mxu0 0.0
    %176 = vmatprep.subr.mxu0 0.0
    %177 = vmatpush1.msra.mxu0 0.0
    %178 = vmatprep.subr.mxu0 0.0
    %179 = vmatpush1.msra.mxu0 0.0
    %180 = vmatprep.subr.mxu0 0.0
    %181 = vmatpush1.msra.mxu0 0.0
    %182 = vmatprep.subr.mxu0 0.0
    %183 = vmatpush1.msra.mxu0 0.0
    %184 = vmatprep.subr.mxu0 0.0
    %185 = vmatpush1.msra.mxu0 0.0
    %186 = vmatprep.subr.mxu0 0.0
    %187 = vmatpush1.msra.mxu0 0.0
    %188 = vmatprep.subr.mxu0 0.0
    %189 = vmatpush1.msra.mxu0 0.0
    %190 = vmatprep.subr.mxu0 0.0
    %191 = vmatpush1.msra.mxu0 0.0
    %192 = vmatprep.subr.mxu0 0.0
    %193 = vmatpush1.msra.mxu0 0.0
    %194 = vmatprep.subr.mxu0 0.0
    %195 = vmatpush1.msra.mxu0 0.0
    %196 = vmatprep.subr.mxu0 0.0
    %197 = vmatpush1.msra.mxu0 0.0
    %198 = vmatprep.subr.mxu0 0.0
    %199 = vmatpush1.msra.mxu0 0.0
    %200 = vmatprep.subr.mxu0 0.0
    %201 = vmatpush1.msra.mxu0 0.0
    %202 = vmatprep.subr.mxu0 0.0
    %203 = vmatpush1.msra.mxu0 0.0
    %204 = vmatprep.subr.mxu0 0.0
    %205 = vmatpush1.msra.mxu0 0.0
    %206 = vmatprep.subr.mxu0 0.0
    %207 = vmatpush1.msra.mxu0 0.0
    %208 = vmatprep.subr.mxu0 0.0
    %209 = vmatpush1.msra.mxu0 0.0
    %210 = vmatprep.subr.mxu0 0.0
    %211 = vmatpush1.msra.mxu0 0.0
    %212 = vmatprep.subr.mxu0 0.0
    %213 = vmatpush1.msra.mxu0 0.0
    %214 = vmatprep.subr.mxu0 0.0
    %215 = vmatpush1.msra.mxu0 0.0
    %216 = vmatprep.subr.mxu0 0.0
    %217 = vmatpush1.msra.mxu0 0.0
    %218 = vmatprep.subr.mxu0 0.0
    %219 = vmatpush1.msra.mxu0 0.0
    %220 = vmatprep.subr.mxu0 0.0
    %221 = vmatpush1.msra.mxu0 0.0
    %222 = vmatprep.subr.mxu0 0.0
    %223 = vmatpush1.msra.mxu0 0.0
    %224 = vmatprep.subr.mxu0 0.0
    %225 = vmatpush1.msra.mxu0 0.0
    %226 = vmatprep.subr.mxu0 0.0
    %227 = vmatpush1.msra.mxu0 0.0
    %228 = vmatprep.subr.mxu0 0.0
    %229 = vmatpush1.msra.mxu0 0.0
    %230 = vmatprep.mubr.f32.mxu0 0.0
    %231 = vmatmul.mubr.f32.gmra.mrb[0].mxu0 %v161
    %v232 = vpop.f32.mrb[0].mxu0
    %v233 = vadd.f32 %v146, %v232
    %v234 = vpop.f32.mrb[0].mxu0
    %v235 = vadd.f32 %v150, %v234
    %236 = vmatprep.mubr.f32.mxu0 0.0
    %237 = vmatmul.mubr.f32.gmra.mrb[0].mxu0 %v164
    %v238 = vpop.f32.mrb[0].mxu0
    %v239 = vadd.f32 %v146, %v238
    %v240 = vpop.f32.mrb[0].mxu0
    %v241 = vadd.f32 %v150, %v240
    %242 = vdwg.mxu0
    %243 = vmatprep.subr.mxu0 %v23
    %244 = vmatpush1.msra.mxu0 %v22
    %245 = vmatprep.subr.mxu0 0.0
    %246 = vmatpush1.msra.mxu0 0.0
    %247 = vmatprep.subr.mxu0 0.0
    %248 = vmatpush1.msra.mxu0 0.0
    %249 = vmatprep.subr.mxu0 0.0
    %250 = vmatpush1.msra.mxu0 0.0
    %251 = vmatprep.subr.mxu0 0.0
    %252 = vmatpush1.msra.mxu0 0.0
    %253 = vmatprep.subr.mxu0 0.0
    %254 = vmatpush1.msra.mxu0 0.0
    %255 = vmatprep.subr.mxu0 0.0
    %256 = vmatpush1.msra.mxu0 0.0
    %257 = vmatprep.subr.mxu0 0.0
    %258 = vmatpush1.msra.mxu0 0.0
    %259 = vmatprep.subr.mxu0 0.0
    %260 = vmatpush1.msra.mxu0 0.0
    %261 = vmatprep.subr.mxu0 0.0
    %262 = vmatpush1.msra.mxu0 0.0
    %263 = vmatprep.subr.mxu0 0.0
    %264 = vmatpush1.msra.mxu0 0.0
    %265 = vmatprep.subr.mxu0 0.0
    %266 = vmatpush1.msra.mxu0 0.0
    %267 = vmatprep.subr.mxu0 0.0
    %268 = vmatpush1.msra.mxu0 0.0
    %269 = vmatprep.subr.mxu0 0.0
    %270 = vmatpush1.msra.mxu0 0.0
    %271 = vmatprep.subr.mxu0 0.0
    %272 = vmatpush1.msra.mxu0 0.0
    %273 = vmatprep.subr.mxu0 0.0
    %274 = vmatpush1.msra.mxu0 0.0
    %275 = vmatprep.subr.mxu0 0.0
    %276 = vmatpush1.msra.mxu0 0.0
    %277 = vmatprep.subr.mxu0 0.0
    %278 = vmatpush1.msra.mxu0 0.0
    %279 = vmatprep.subr.mxu0 0.0
    %280 = vmatpush1.msra.mxu0 0.0
    %281 = vmatprep.subr.mxu0 0.0
    %282 = vmatpush1.msra.mxu0 0.0
    %283 = vmatprep.subr.mxu0 0.0
    %284 = vmatpush1.msra.mxu0 0.0
    %285 = vmatprep.subr.mxu0 0.0
    %286 = vmatpush1.msra.mxu0 0.0
    %287 = vmatprep.subr.mxu0 0.0
    %288 = vmatpush1.msra.mxu0 0.0
    %289 = vmatprep.subr.mxu0 0.0
    %290 = vmatpush1.msra.mxu0 0.0
    %291 = vmatprep.subr.mxu0 0.0
    %292 = vmatpush1.msra.mxu0 0.0
    %293 = vmatprep.subr.mxu0 0.0
    %294 = vmatpush1.msra.mxu0 0.0
    %295 = vmatprep.subr.mxu0 0.0
    %296 = vmatpush1.msra.mxu0 0.0
    %297 = vmatprep.subr.mxu0 0.0
    %298 = vmatpush1.msra.mxu0 0.0
    %299 = vmatprep.subr.mxu0 0.0
    %300 = vmatpush1.msra.mxu0 0.0
    %301 = vmatprep.subr.mxu0 0.0
    %302 = vmatpush1.msra.mxu0 0.0
    %303 = vmatprep.subr.mxu0 0.0
    %304 = vmatpush1.msra.mxu0 0.0
    %305 = vmatprep.subr.mxu0 0.0
    %306 = vmatpush1.msra.mxu0 0.0
    %307 = vmatprep.mubr.f32.mxu0 0.0
    %308 = vmatmul.mubr.f32.gmra.mrb[0].mxu0 %v161
    %v309 = vpop.f32.mrb[0].mxu0
    %v310 = vadd.f32 %v154, %v309
    %v311 = vpop.f32.mrb[0].mxu0
    %v312 = vadd.f32 %v158, %v311
    %313 = vmatprep.mubr.f32.mxu0 0.0
    %314 = vmatmul.mubr.f32.gmra.mrb[0].mxu0 %v164
    %v315 = vpop.f32.mrb[0].mxu0
    %v316 = vadd.f32 %v154, %v315
    %v317 = vpop.f32.mrb[0].mxu0
    %v318 = vadd.f32 %v158, %v317
    %319 = vdwg.mxu0
    %322 = vrot.lane.b32.xlu0 %v233, 112
    %v323 = vpop.permute.xlu0 %322
    %324 = vrot.lane.b32.xlu0 %v239, 112
    %v325 = vpop.permute.xlu0 %324
    %326 = vrot.lane.b32.xlu0 %v233, 96
    %v327 = vpop.permute.xlu0 %326
    %328 = vrot.lane.b32.xlu0 %v239, 96
    %v329 = vpop.permute.xlu0 %328
    %330 = vrot.lane.b32.xlu0 %v233, 80
    %v331 = vpop.permute.xlu0 %330
    %332 = vrot.lane.b32.xlu0 %v239, 80
    %v333 = vpop.permute.xlu0 %332
    %334 = vrot.lane.b32.xlu0 %v233, 64
    %v335 = vpop.permute.xlu0 %334
    %336 = vrot.lane.b32.xlu0 %v239, 64
    %v337 = vpop.permute.xlu0 %336
    %340 = vrot.lane.b32.xlu0 %v235, 112
    %v341 = vpop.permute.xlu0 %340
    %342 = vrot.lane.b32.xlu0 %v241, 112
    %v343 = vpop.permute.xlu0 %342
    %344 = vrot.lane.b32.xlu0 %v235, 96
    %v345 = vpop.permute.xlu0 %344
    %346 = vrot.lane.b32.xlu0 %v241, 96
    %v347 = vpop.permute.xlu0 %346
    %348 = vrot.lane.b32.xlu0 %v235, 80
    %v349 = vpop.permute.xlu0 %348
    %350 = vrot.lane.b32.xlu0 %v241, 80
    %v351 = vpop.permute.xlu0 %350
    %352 = vrot.lane.b32.xlu0 %v235, 64
    %v353 = vpop.permute.xlu0 %352
    %354 = vrot.lane.b32.xlu0 %v241, 64
    %v355 = vpop.permute.xlu0 %354
    %358 = vrot.lane.b32.xlu0 %v310, 112
    %v359 = vpop.permute.xlu0 %358
    %360 = vrot.lane.b32.xlu0 %v316, 112
    %v361 = vpop.permute.xlu0 %360
    %364 = vrot.lane.b32.xlu0 %v310, 96
    %v365 = vpop.permute.xlu0 %364
    %366 = vrot.lane.b32.xlu0 %v316, 96
    %v367 = vpop.permute.xlu0 %366
    %370 = vrot.lane.b32.xlu0 %v310, 80
    %v371 = vpop.permute.xlu0 %370
    %372 = vrot.lane.b32.xlu0 %v316, 80
    %v373 = vpop.permute.xlu0 %372
    %376 = vrot.lane.b32.xlu0 %v310, 64
    %v377 = vpop.permute.xlu0 %376
    %378 = vrot.lane.b32.xlu0 %v316, 64
    %v379 = vpop.permute.xlu0 %378
    %vm382 = vcmask 130048
    %v383 = vsel %vm382, %v233, 0
    %v385 = vsel %vm382, %v239, 0
    %v387 = vsel %vm382, %v235, 0
    %v389 = vsel %vm382, %v241, 0
    %391 = vmatprep.subr.mxu0 0.0
    %392 = vmatpush1.xpose.msra.mxu0 %v387
    %393 = vmatprep.subr.mxu0 0.0
    %394 = vmatpush1.xpose.msra.mxu0 %v389
    %395 = vmatprep.subr.mxu0 0.0
    %396 = vmatpush1.xpose.msra.mxu0 0.0
    %397 = vmatprep.subr.mxu0 0.0
    %398 = vmatpush1.xpose.msra.mxu0 0.0
    %399 = vmatprep.subr.mxu0 0.0
    %400 = vmatpush1.xpose.msra.mxu0 0.0
    %401 = vmatprep.subr.mxu0 0.0
    %402 = vmatpush1.xpose.msra.mxu0 0.0
    %403 = vmatprep.subr.mxu0 0.0
    %404 = vmatpush1.xpose.msra.mxu0 0.0
    %405 = vmatprep.subr.mxu0 0.0
    %406 = vmatpush1.xpose.msra.mxu0 0.0
    %407 = vmatprep.subr.mxu0 0.0
    %408 = vmatpush1.xpose.msra.mxu0 0.0
    %409 = vmatprep.subr.mxu0 0.0
    %410 = vmatpush1.xpose.msra.mxu0 0.0
    %411 = vmatprep.subr.mxu0 0.0
    %412 = vmatpush1.xpose.msra.mxu0 0.0
    %413 = vmatprep.subr.mxu0 0.0
    %414 = vmatpush1.xpose.msra.mxu0 0.0
    %415 = vmatprep.subr.mxu0 0.0
    %416 = vmatpush1.xpose.msra.mxu0 0.0
    %417 = vmatprep.subr.mxu0 0.0
    %418 = vmatpush1.xpose.msra.mxu0 0.0
    %419 = vmatprep.subr.mxu0 0.0
    %420 = vmatpush1.xpose.msra.mxu0 0.0
    %421 = vmatprep.subr.mxu0 0.0
    %422 = vmatpush1.xpose.msra.mxu0 0.0
    %423 = vmatprep.subr.mxu0 0.0
    %424 = vmatpush1.xpose.msra.mxu0 0.0
    %425 = vmatprep.subr.mxu0 0.0
    %426 = vmatpush1.xpose.msra.mxu0 0.0
    %427 = vmatprep.subr.mxu0 0.0
    %428 = vmatpush1.xpose.msra.mxu0 0.0
    %429 = vmatprep.subr.mxu0 0.0
    %430 = vmatpush1.xpose.msra.mxu0 0.0
    %431 = vmatprep.subr.mxu0 0.0
    %432 = vmatpush1.xpose.msra.mxu0 0.0
    %433 = vmatprep.subr.mxu0 0.0
    %434 = vmatpush1.xpose.msra.mxu0 0.0
    %435 = vmatprep.subr.mxu0 0.0
    %436 = vmatpush1.xpose.msra.mxu0 0.0
    %437 = vmatprep.subr.mxu0 0.0
    %438 = vmatpush1.xpose.msra.mxu0 0.0
    %439 = vmatprep.subr.mxu0 0.0
    %440 = vmatpush1.xpose.msra.mxu0 0.0
    %441 = vmatprep.subr.mxu0 0.0
    %442 = vmatpush1.xpose.msra.mxu0 0.0
    %443 = vmatprep.subr.mxu0 0.0
    %444 = vmatpush1.xpose.msra.mxu0 0.0
    %445 = vmatprep.subr.mxu0 0.0
    %446 = vmatpush1.xpose.msra.mxu0 0.0
    %447 = vmatprep.subr.mxu0 0.0
    %448 = vmatpush1.xpose.msra.mxu0 0.0
    %449 = vmatprep.subr.mxu0 0.0
    %450 = vmatpush1.xpose.msra.mxu0 0.0
    %451 = vmatprep.subr.mxu0 0.0
    %452 = vmatpush1.xpose.msra.mxu0 0.0
    %453 = vmatprep.subr.mxu0 0.0
    %454 = vmatpush1.xpose.msra.mxu0 0.0
    %455 = vmatprep.mubr.f32.mxu0 0.0
    %456 = vmatmul.mubr.f32.gmra.mrb[0].mxu0 %v383
    %v457 = vpop.f32.mrb[0].mxu0
    %v458 = vadd.f32 0.0, %v457
    %v459 = vpop.f32.mrb[0].mxu0
    %460 = vmatprep.mubr.f32.mxu0 0.0
    %461 = vmatmul.mubr.f32.gmra.mrb[0].mxu0 %v385
    %v462 = vpop.f32.mrb[0].mxu0
    %v463 = vadd.f32 0.0, %v462
    %v464 = vpop.f32.mrb[0].mxu0
    %465 = vdwg.mxu0
    %v466 = vsel %vm382, %v323, 0
    %v468 = vsel %vm382, %v325, 0
    %v470 = vsel %vm382, %v341, 0
    %v472 = vsel %vm382, %v343, 0
    %474 = vmatprep.subr.mxu0 0.0
    %475 = vmatpush1.xpose.msra.mxu0 %v470
    %476 = vmatprep.subr.mxu0 0.0
    %477 = vmatpush1.xpose.msra.mxu0 %v472
    %478 = vmatprep.subr.mxu0 0.0
    %479 = vmatpush1.xpose.msra.mxu0 0.0
    %480 = vmatprep.subr.mxu0 0.0
    %481 = vmatpush1.xpose.msra.mxu0 0.0
    %482 = vmatprep.subr.mxu0 0.0
    %483 = vmatpush1.xpose.msra.mxu0 0.0
    %484 = vmatprep.subr.mxu0 0.0
    %485 = vmatpush1.xpose.msra.mxu0 0.0
    %486 = vmatprep.subr.mxu0 0.0
    %487 = vmatpush1.xpose.msra.mxu0 0.0
    %488 = vmatprep.subr.mxu0 0.0
    %489 = vmatpush1.xpose.msra.mxu0 0.0
    %490 = vmatprep.subr.mxu0 0.0
    %491 = vmatpush1.xpose.msra.mxu0 0.0
    %492 = vmatprep.subr.mxu0 0.0
    %493 = vmatpush1.xpose.msra.mxu0 0.0
    %494 = vmatprep.subr.mxu0 0.0
    %495 = vmatpush1.xpose.msra.mxu0 0.0
    %496 = vmatprep.subr.mxu0 0.0
    %497 = vmatpush1.xpose.msra.mxu0 0.0
    %498 = vmatprep.subr.mxu0 0.0
    %499 = vmatpush1.xpose.msra.mxu0 0.0
    %500 = vmatprep.subr.mxu0 0.0
    %501 = vmatpush1.xpose.msra.mxu0 0.0
    %502 = vmatprep.subr.mxu0 0.0
    %503 = vmatpush1.xpose.msra.mxu0 0.0
    %504 = vmatprep.subr.mxu0 0.0
    %505 = vmatpush1.xpose.msra.mxu0 0.0
    %506 = vmatprep.subr.mxu0 0.0
    %507 = vmatpush1.xpose.msra.mxu0 0.0
    %508 = vmatprep.subr.mxu0 0.0
    %509 = vmatpush1.xpose.msra.mxu0 0.0
    %510 = vmatprep.subr.mxu0 0.0
    %511 = vmatpush1.xpose.msra.mxu0 0.0
    %512 = vmatprep.subr.mxu0 0.0
    %513 = vmatpush1.xpose.msra.mxu0 0.0
    %514 = vmatprep.subr.mxu0 0.0
    %515 = vmatpush1.xpose.msra.mxu0 0.0
    %516 = vmatprep.subr.mxu0 0.0
    %517 = vmatpush1.xpose.msra.mxu0 0.0
    %518 = vmatprep.subr.mxu0 0.0
    %519 = vmatpush1.xpose.msra.mxu0 0.0
    %520 = vmatprep.subr.mxu0 0.0
    %521 = vmatpush1.xpose.msra.mxu0 0.0
    %522 = vmatprep.subr.mxu0 0.0
    %523 = vmatpush1.xpose.msra.mxu0 0.0
    %524 = vmatprep.subr.mxu0 0.0
    %525 = vmatpush1.xpose.msra.mxu0 0.0
    %526 = vmatprep.subr.mxu0 0.0
    %527 = vmatpush1.xpose.msra.mxu0 0.0
    %528 = vmatprep.subr.mxu0 0.0
    %529 = vmatpush1.xpose.msra.mxu0 0.0
    %530 = vmatprep.subr.mxu0 0.0
    %531 = vmatpush1.xpose.msra.mxu0 0.0
    %532 = vmatprep.subr.mxu0 0.0
    %533 = vmatpush1.xpose.msra.mxu0 0.0
    %534 = vmatprep.subr.mxu0 0.0
    %535 = vmatpush1.xpose.msra.mxu0 0.0
    %536 = vmatprep.subr.mxu0 0.0
    %537 = vmatpush1.xpose.msra.mxu0 0.0
    %538 = vmatprep.mubr.f32.mxu0 0.0
    %539 = vmatmul.mubr.f32.gmra.mrb[0].mxu0 %v466
    %v540 = vpop.f32.mrb[0].mxu0
    %v541 = vadd.f32 0.0, %v540
    %v542 = vpop.f32.mrb[0].mxu0
    %543 = vmatprep.mubr.f32.mxu0 0.0
    %544 = vmatmul.mubr.f32.gmra.mrb[0].mxu0 %v468
    %v545 = vpop.f32.mrb[0].mxu0
    %v546 = vadd.f32 0.0, %v545
    %v547 = vpop.f32.mrb[0].mxu0
    %548 = vdwg.mxu0
    %v549 = vsel %vm382, %v327, 0
    %v551 = vsel %vm382, %v329, 0
    %v553 = vsel %vm382, %v345, 0
    %v555 = vsel %vm382, %v347, 0
    %557 = vmatprep.subr.mxu0 0.0
    %558 = vmatpush1.xpose.msra.mxu0 %v553
    %559 = vmatprep.subr.mxu0 0.0
    %560 = vmatpush1.xpose.msra.mxu0 %v555
    %561 = vmatprep.subr.mxu0 0.0
    %562 = vmatpush1.xpose.msra.mxu0 0.0
    %563 = vmatprep.subr.mxu0 0.0
    %564 = vmatpush1.xpose.msra.mxu0 0.0
    %565 = vmatprep.subr.mxu0 0.0
    %566 = vmatpush1.xpose.msra.mxu0 0.0
    %567 = vmatprep.subr.mxu0 0.0
    %568 = vmatpush1.xpose.msra.mxu0 0.0
    %569 = vmatprep.subr.mxu0 0.0
    %570 = vmatpush1.xpose.msra.mxu0 0.0
    %571 = vmatprep.subr.mxu0 0.0
    %572 = vmatpush1.xpose.msra.mxu0 0.0
    %573 = vmatprep.subr.mxu0 0.0
    %574 = vmatpush1.xpose.msra.mxu0 0.0
    %575 = vmatprep.subr.mxu0 0.0
    %576 = vmatpush1.xpose.msra.mxu0 0.0
    %577 = vmatprep.subr.mxu0 0.0
    %578 = vmatpush1.xpose.msra.mxu0 0.0
    %579 = vmatprep.subr.mxu0 0.0
    %580 = vmatpush1.xpose.msra.mxu0 0.0
    %581 = vmatprep.subr.mxu0 0.0
    %582 = vmatpush1.xpose.msra.mxu0 0.0
    %583 = vmatprep.subr.mxu0 0.0
    %584 = vmatpush1.xpose.msra.mxu0 0.0
    %585 = vmatprep.subr.mxu0 0.0
    %586 = vmatpush1.xpose.msra.mxu0 0.0
    %587 = vmatprep.subr.mxu0 0.0
    %588 = vmatpush1.xpose.msra.mxu0 0.0
    %589 = vmatprep.subr.mxu0 0.0
    %590 = vmatpush1.xpose.msra.mxu0 0.0
    %591 = vmatprep.subr.mxu0 0.0
    %592 = vmatpush1.xpose.msra.mxu0 0.0
    %593 = vmatprep.subr.mxu0 0.0
    %594 = vmatpush1.xpose.msra.mxu0 0.0
    %595 = vmatprep.subr.mxu0 0.0
    %596 = vmatpush1.xpose.msra.mxu0 0.0
    %597 = vmatprep.subr.mxu0 0.0
    %598 = vmatpush1.xpose.msra.mxu0 0.0
    %599 = vmatprep.subr.mxu0 0.0
    %600 = vmatpush1.xpose.msra.mxu0 0.0
    %601 = vmatprep.subr.mxu0 0.0
    %602 = vmatpush1.xpose.msra.mxu0 0.0
    %603 = vmatprep.subr.mxu0 0.0
    %604 = vmatpush1.xpose.msra.mxu0 0.0
    %605 = vmatprep.subr.mxu0 0.0
    %606 = vmatpush1.xpose.msra.mxu0 0.0
    %607 = vmatprep.subr.mxu0 0.0
    %608 = vmatpush1.xpose.msra.mxu0 0.0
    %609 = vmatprep.subr.mxu0 0.0
    %610 = vmatpush1.xpose.msra.mxu0 0.0
    %611 = vmatprep.subr.mxu0 0.0
    %612 = vmatpush1.xpose.msra.mxu0 0.0
    %613 = vmatprep.subr.mxu0 0.0
    %614 = vmatpush1.xpose.msra.mxu0 0.0
    %615 = vmatprep.subr.mxu0 0.0
    %616 = vmatpush1.xpose.msra.mxu0 0.0
    %617 = vmatprep.subr.mxu0 0.0
    %618 = vmatpush1.xpose.msra.mxu0 0.0
    %619 = vmatprep.subr.mxu0 0.0
    %620 = vmatpush1.xpose.msra.mxu0 0.0
    %621 = vmatprep.mubr.f32.mxu0 0.0
    %622 = vmatmul.mubr.f32.gmra.mrb[0].mxu0 %v549
    %v623 = vpop.f32.mrb[0].mxu0
    %v624 = vadd.f32 0.0, %v623
    %v625 = vpop.f32.mrb[0].mxu0
    %626 = vmatprep.mubr.f32.mxu0 0.0
    %627 = vmatmul.mubr.f32.gmra.mrb[0].mxu0 %v551
    %v628 = vpop.f32.mrb[0].mxu0
    %v629 = vadd.f32 0.0, %v628
    %v630 = vpop.f32.mrb[0].mxu0
    %631 = vdwg.mxu0
    %v632 = vsel %vm382, %v331, 0
    %v634 = vsel %vm382, %v333, 0
    %v636 = vsel %vm382, %v349, 0
    %v638 = vsel %vm382, %v351, 0
    %640 = vmatprep.subr.mxu0 0.0
    %641 = vmatpush1.xpose.msra.mxu0 %v636
    %642 = vmatprep.subr.mxu0 0.0
    %643 = vmatpush1.xpose.msra.mxu0 %v638
    %644 = vmatprep.subr.mxu0 0.0
    %645 = vmatpush1.xpose.msra.mxu0 0.0
    %646 = vmatprep.subr.mxu0 0.0
    %647 = vmatpush1.xpose.msra.mxu0 0.0
    %648 = vmatprep.subr.mxu0 0.0
    %649 = vmatpush1.xpose.msra.mxu0 0.0
    %650 = vmatprep.subr.mxu0 0.0
    %651 = vmatpush1.xpose.msra.mxu0 0.0
    %652 = vmatprep.subr.mxu0 0.0
    %653 = vmatpush1.xpose.msra.mxu0 0.0
    %654 = vmatprep.subr.mxu0 0.0
    %655 = vmatpush1.xpose.msra.mxu0 0.0
    %656 = vmatprep.subr.mxu0 0.0
    %657 = vmatpush1.xpose.msra.mxu0 0.0
    %658 = vmatprep.subr.mxu0 0.0
    %659 = vmatpush1.xpose.msra.mxu0 0.0
    %660 = vmatprep.subr.mxu0 0.0
    %661 = vmatpush1.xpose.msra.mxu0 0.0
    %662 = vmatprep.subr.mxu0 0.0
    %663 = vmatpush1.xpose.msra.mxu0 0.0
    %664 = vmatprep.subr.mxu0 0.0
    %665 = vmatpush1.xpose.msra.mxu0 0.0
    %666 = vmatprep.subr.mxu0 0.0
    %667 = vmatpush1.xpose.msra.mxu0 0.0
    %668 = vmatprep.subr.mxu0 0.0
    %669 = vmatpush1.xpose.msra.mxu0 0.0
    %670 = vmatprep.subr.mxu0 0.0
    %671 = vmatpush1.xpose.msra.mxu0 0.0
    %672 = vmatprep.subr.mxu0 0.0
    %673 = vmatpush1.xpose.msra.mxu0 0.0
    %674 = vmatprep.subr.mxu0 0.0
    %675 = vmatpush1.xpose.msra.mxu0 0.0
    %676 = vmatprep.subr.mxu0 0.0
    %677 = vmatpush1.xpose.msra.mxu0 0.0
    %678 = vmatprep.subr.mxu0 0.0
    %679 = vmatpush1.xpose.msra.mxu0 0.0
    %680 = vmatprep.subr.mxu0 0.0
    %681 = vmatpush1.xpose.msra.mxu0 0.0
    %682 = vmatprep.subr.mxu0 0.0
    %683 = vmatpush1.xpose.msra.mxu0 0.0
    %684 = vmatprep.subr.mxu0 0.0
    %685 = vmatpush1.xpose.msra.mxu0 0.0
    %686 = vmatprep.subr.mxu0 0.0
    %687 = vmatpush1.xpose.msra.mxu0 0.0
    %688 = vmatprep.subr.mxu0 0.0
    %689 = vmatpush1.xpose.msra.mxu0 0.0
    %690 = vmatprep.subr.mxu0 0.0
    %691 = vmatpush1.xpose.msra.mxu0 0.0
    %692 = vmatprep.subr.mxu0 0.0
    %693 = vmatpush1.xpose.msra.mxu0 0.0
    %694 = vmatprep.subr.mxu0 0.0
    %695 = vmatpush1.xpose.msra.mxu0 0.0
    %696 = vmatprep.subr.mxu0 0.0
    %697 = vmatpush1.xpose.msra.mxu0 0.0
    %698 = vmatprep.subr.mxu0 0.0
    %699 = vmatpush1.xpose.msra.mxu0 0.0
    %700 = vmatprep.subr.mxu0 0.0
    %701 = vmatpush1.xpose.msra.mxu0 0.0
    %702 = vmatprep.subr.mxu0 0.0
    %703 = vmatpush1.xpose.msra.mxu0 0.0
    %704 = vmatprep.mubr.f32.mxu0 0.0
    %705 = vmatmul.mubr.f32.gmra.mrb[0].mxu0 %v632
    %v706 = vpop.f32.mrb[0].mxu0
    %v707 = vadd.f32 0.0, %v706
    %v708 = vpop.f32.mrb[0].mxu0
    %709 = vmatprep.mubr.f32.mxu0 0.0
    %710 = vmatmul.mubr.f32.gmra.mrb[0].mxu0 %v634
    %v711 = vpop.f32.mrb[0].mxu0
    %v712 = vadd.f32 0.0, %v711
    %v713 = vpop.f32.mrb[0].mxu0
    %714 = vdwg.mxu0
    %v715 = vsel %vm382, %v335, 0
    %v717 = vsel %vm382, %v337, 0
    %v719 = vsel %vm382, %v353, 0
    %v721 = vsel %vm382, %v355, 0
    %723 = vmatprep.subr.mxu0 0.0
    %724 = vmatpush1.xpose.msra.mxu0 %v719
    %725 = vmatprep.subr.mxu0 0.0
    %726 = vmatpush1.xpose.msra.mxu0 %v721
    %727 = vmatprep.subr.mxu0 0.0
    %728 = vmatpush1.xpose.msra.mxu0 0.0
    %729 = vmatprep.subr.mxu0 0.0
    %730 = vmatpush1.xpose.msra.mxu0 0.0
    %731 = vmatprep.subr.mxu0 0.0
    %732 = vmatpush1.xpose.msra.mxu0 0.0
    %733 = vmatprep.subr.mxu0 0.0
    %734 = vmatpush1.xpose.msra.mxu0 0.0
    %735 = vmatprep.subr.mxu0 0.0
    %736 = vmatpush1.xpose.msra.mxu0 0.0
    %737 = vmatprep.subr.mxu0 0.0
    %738 = vmatpush1.xpose.msra.mxu0 0.0
    %739 = vmatprep.subr.mxu0 0.0
    %740 = vmatpush1.xpose.msra.mxu0 0.0
    %741 = vmatprep.subr.mxu0 0.0
    %742 = vmatpush1.xpose.msra.mxu0 0.0
    %743 = vmatprep.subr.mxu0 0.0
    %744 = vmatpush1.xpose.msra.mxu0 0.0
    %745 = vmatprep.subr.mxu0 0.0
    %746 = vmatpush1.xpose.msra.mxu0 0.0
    %747 = vmatprep.subr.mxu0 0.0
    %748 = vmatpush1.xpose.msra.mxu0 0.0
    %749 = vmatprep.subr.mxu0 0.0
    %750 = vmatpush1.xpose.msra.mxu0 0.0
    %751 = vmatprep.subr.mxu0 0.0
    %752 = vmatpush1.xpose.msra.mxu0 0.0
    %753 = vmatprep.subr.mxu0 0.0
    %754 = vmatpush1.xpose.msra.mxu0 0.0
    %755 = vmatprep.subr.mxu0 0.0
    %756 = vmatpush1.xpose.msra.mxu0 0.0
    %757 = vmatprep.subr.mxu0 0.0
    %758 = vmatpush1.xpose.msra.mxu0 0.0
    %759 = vmatprep.subr.mxu0 0.0
    %760 = vmatpush1.xpose.msra.mxu0 0.0
    %761 = vmatprep.subr.mxu0 0.0
    %762 = vmatpush1.xpose.msra.mxu0 0.0
    %763 = vmatprep.subr.mxu0 0.0
    %764 = vmatpush1.xpose.msra.mxu0 0.0
    %765 = vmatprep.subr.mxu0 0.0
    %766 = vmatpush1.xpose.msra.mxu0 0.0
    %767 = vmatprep.subr.mxu0 0.0
    %768 = vmatpush1.xpose.msra.mxu0 0.0
    %769 = vmatprep.subr.mxu0 0.0
    %770 = vmatpush1.xpose.msra.mxu0 0.0
    %771 = vmatprep.subr.mxu0 0.0
    %772 = vmatpush1.xpose.msra.mxu0 0.0
    %773 = vmatprep.subr.mxu0 0.0
    %774 = vmatpush1.xpose.msra.mxu0 0.0
    %775 = vmatprep.subr.mxu0 0.0
    %776 = vmatpush1.xpose.msra.mxu0 0.0
    %777 = vmatprep.subr.mxu0 0.0
    %778 = vmatpush1.xpose.msra.mxu0 0.0
    %779 = vmatprep.subr.mxu0 0.0
    %780 = vmatpush1.xpose.msra.mxu0 0.0
    %781 = vmatprep.subr.mxu0 0.0
    %782 = vmatpush1.xpose.msra.mxu0 0.0
    %783 = vmatprep.subr.mxu0 0.0
    %784 = vmatpush1.xpose.msra.mxu0 0.0
    %785 = vmatprep.subr.mxu0 0.0
    %786 = vmatpush1.xpose.msra.mxu0 0.0
    %787 = vmatprep.mubr.f32.mxu0 0.0
    %788 = vmatmul.mubr.f32.gmra.mrb[0].mxu0 %v715
    %v789 = vpop.f32.mrb[0].mxu0
    %v790 = vadd.f32 0.0, %v789
    %v791 = vpop.f32.mrb[0].mxu0
    %792 = vmatprep.mubr.f32.mxu0 0.0
    %793 = vmatmul.mubr.f32.gmra.mrb[0].mxu0 %v717
    %v794 = vpop.f32.mrb[0].mxu0
    %v795 = vadd.f32 0.0, %v794
    %v796 = vpop.f32.mrb[0].mxu0
    %797 = vdwg.mxu0
    %vm798 = vcmp.gt.f32.partialorder %v135, 0.0
    %vm799 = vcmp.gt.f32.partialorder %v140, 0.0
    %v800 = vsel %vm798, %v458, -1e+30
    %v801 = vsel %vm799, %v463, -1e+30
    %v802 = vsel %vm798, %v541, -1e+30
    %v803 = vsel %vm799, %v546, -1e+30
    %v804 = vsel %vm798, %v624, -1e+30
    %v805 = vsel %vm799, %v629, -1e+30
    %v806 = vsel %vm798, %v707, -1e+30
    %v807 = vsel %vm799, %v712, -1e+30
    %v808 = vsel %vm798, %v790, -1e+30
    %v809 = vsel %vm799, %v795, -1e+30
    %v810 = vsel %vm382, %v800, -inf
    %811 = vmax.xlane.f32.xlu0 %v810
    %v812 = vpop.xlane.xlu0 %811
    %v813 = vsel %vm382, %v801, -inf
    %814 = vmax.xlane.f32.xlu0 %v813
    %v815 = vpop.xlane.xlu0 %814
    %v816 = vsel %vm382, %v802, -inf
    %817 = vmax.xlane.f32.xlu0 %v816
    %v818 = vpop.xlane.xlu0 %817
    %v819 = vsel %vm382, %v803, -inf
    %820 = vmax.xlane.f32.xlu0 %v819
    %v821 = vpop.xlane.xlu0 %820
    %v822 = vsel %vm382, %v804, -inf
    %823 = vmax.xlane.f32.xlu0 %v822
    %v824 = vpop.xlane.xlu0 %823
    %v825 = vsel %vm382, %v805, -inf
    %826 = vmax.xlane.f32.xlu0 %v825
    %v827 = vpop.xlane.xlu0 %826
    %v828 = vsel %vm382, %v806, -inf
    %829 = vmax.xlane.f32.xlu0 %v828
    %v830 = vpop.xlane.xlu0 %829
    %v831 = vsel %vm382, %v807, -inf
    %832 = vmax.xlane.f32.xlu0 %v831
    %v833 = vpop.xlane.xlu0 %832
    %v834 = vsel %vm382, %v808, -inf
    %835 = vmax.xlane.f32.xlu0 %v834
    %v836 = vpop.xlane.xlu0 %835
    %v837 = vsel %vm382, %v809, -inf
    %838 = vmax.xlane.f32.xlu0 %v837
    %v839 = vpop.xlane.xlu0 %838
    %v840 = vsub.f32 %v800, %v812
    %v841 = vsub.f32 %v801, %v815
    %v842 = vsub.f32 %v802, %v818
    %v843 = vsub.f32 %v803, %v821
    %v844 = vsub.f32 %v804, %v824
    %v845 = vsub.f32 %v805, %v827
    %v846 = vsub.f32 %v806, %v830
    %v847 = vsub.f32 %v807, %v833
    %v848 = vsub.f32 %v808, %v836
    %v849 = vsub.f32 %v809, %v839
    %v850 = vmul.f32 %v840, 1.442695
    %v851 = vpow.pop %v850
    %v852 = vmul.f32 %v841, 1.442695
    %v853 = vpow.pop %v852
    %v854 = vmul.f32 %v842, 1.442695
    %v855 = vpow.pop %v854
    %v856 = vmul.f32 %v843, 1.442695
    %v857 = vpow.pop %v856
    %v858 = vmul.f32 %v844, 1.442695
    %v859 = vpow.pop %v858
    %v860 = vmul.f32 %v845, 1.442695
    %v861 = vpow.pop %v860
    %v862 = vmul.f32 %v846, 1.442695
    %v863 = vpow.pop %v862
    %v864 = vmul.f32 %v847, 1.442695
    %v865 = vpow.pop %v864
    %v866 = vmul.f32 %v848, 1.442695
    %v867 = vpow.pop %v866
    %v868 = vmul.f32 %v849, 1.442695
    %v869 = vpow.pop %v868
    %v870 = vmul.f32 %v851, %v135
    %v871 = vmul.f32 %v853, %v140
    %v872 = vmul.f32 %v855, %v135
    %v873 = vmul.f32 %v857, %v140
    %v874 = vmul.f32 %v859, %v135
    %v875 = vmul.f32 %v861, %v140
    %v876 = vmul.f32 %v863, %v135
    %v877 = vmul.f32 %v865, %v140
    %v878 = vmul.f32 %v867, %v135
    %v879 = vmul.f32 %v869, %v140
    %v880 = vsel %vm382, %v870, 0.0
    %881 = vadd.xlane.f32.xlu0 %v880
    %v882 = vpop.xlane.xlu0 %881
    %v883 = vsel %vm382, %v871, 0.0
    %884 = vadd.xlane.f32.xlu0 %v883
    %v885 = vpop.xlane.xlu0 %884
    %v886 = vsel %vm382, %v872, 0.0
    %887 = vadd.xlane.f32.xlu0 %v886
    %v888 = vpop.xlane.xlu0 %887
    %v889 = vsel %vm382, %v873, 0.0
    %890 = vadd.xlane.f32.xlu0 %v889
    %v891 = vpop.xlane.xlu0 %890
    %v892 = vsel %vm382, %v874, 0.0
    %893 = vadd.xlane.f32.xlu0 %v892
    %v894 = vpop.xlane.xlu0 %893
    %v895 = vsel %vm382, %v875, 0.0
    %896 = vadd.xlane.f32.xlu0 %v895
    %v897 = vpop.xlane.xlu0 %896
    %v898 = vsel %vm382, %v876, 0.0
    %899 = vadd.xlane.f32.xlu0 %v898
    %v900 = vpop.xlane.xlu0 %899
    %v901 = vsel %vm382, %v877, 0.0
    %902 = vadd.xlane.f32.xlu0 %v901
    %v903 = vpop.xlane.xlu0 %902
    %v904 = vsel %vm382, %v878, 0.0
    %905 = vadd.xlane.f32.xlu0 %v904
    %v906 = vpop.xlane.xlu0 %905
    %v907 = vsel %vm382, %v879, 0.0
    %908 = vadd.xlane.f32.xlu0 %v907
    %v909 = vpop.xlane.xlu0 %908
    %v910 = vmax.f32 %v882, 1e-30
    %v911 = vmax.f32 %v885, 1e-30
    %v912 = vmax.f32 %v888, 1e-30
    %v913 = vmax.f32 %v891, 1e-30
    %v914 = vmax.f32 %v894, 1e-30
    %v915 = vmax.f32 %v897, 1e-30
    %v916 = vmax.f32 %v900, 1e-30
    %v917 = vmax.f32 %v903, 1e-30
    %v918 = vmax.f32 %v906, 1e-30
    %v919 = vmax.f32 %v909, 1e-30
    %v920 = vrcp.pop %v910
    %v921 = vrcp.pop %v911
    %v922 = vrcp.pop %v912
    %v923 = vrcp.pop %v913
    %v924 = vrcp.pop %v914
    %v925 = vrcp.pop %v915
    %v926 = vrcp.pop %v916
    %v927 = vrcp.pop %v917
    %v928 = vrcp.pop %v918
    %v929 = vrcp.pop %v919
    %v930 = vmul.f32 %v870, %v920
    %v931 = vmul.f32 %v871, %v921
    %v932 = vmul.f32 %v872, %v922
    %v933 = vmul.f32 %v873, %v923
    %v934 = vmul.f32 %v874, %v924
    %v935 = vmul.f32 %v875, %v925
    %v936 = vmul.f32 %v876, %v926
    %v937 = vmul.f32 %v877, %v927
    %v938 = vmul.f32 %v878, %v928
    %v939 = vmul.f32 %v879, %v929
    %v941 = vsel %vm382, %v930, 0
    %v944 = vsel %vm382, %v931, 0
    %946 = vmatprep.subr.mxu0 0.0
    %947 = vmatpush1.msra.mxu0 %v310
    %948 = vmatprep.subr.mxu0 0.0
    %949 = vmatpush1.msra.mxu0 %v316
    %950 = vmatprep.subr.mxu0 0.0
    %951 = vmatpush1.msra.mxu0 0.0
    %952 = vmatprep.subr.mxu0 0.0
    %953 = vmatpush1.msra.mxu0 0.0
    %954 = vmatprep.subr.mxu0 0.0
    %955 = vmatpush1.msra.mxu0 0.0
    %956 = vmatprep.subr.mxu0 0.0
    %957 = vmatpush1.msra.mxu0 0.0
    %958 = vmatprep.subr.mxu0 0.0
    %959 = vmatpush1.msra.mxu0 0.0
    %960 = vmatprep.subr.mxu0 0.0
    %961 = vmatpush1.msra.mxu0 0.0
    %962 = vmatprep.subr.mxu0 0.0
    %963 = vmatpush1.msra.mxu0 0.0
    %964 = vmatprep.subr.mxu0 0.0
    %965 = vmatpush1.msra.mxu0 0.0
    %966 = vmatprep.subr.mxu0 0.0
    %967 = vmatpush1.msra.mxu0 0.0
    %968 = vmatprep.subr.mxu0 0.0
    %969 = vmatpush1.msra.mxu0 0.0
    %970 = vmatprep.subr.mxu0 0.0
    %971 = vmatpush1.msra.mxu0 0.0
    %972 = vmatprep.subr.mxu0 0.0
    %973 = vmatpush1.msra.mxu0 0.0
    %974 = vmatprep.subr.mxu0 0.0
    %975 = vmatpush1.msra.mxu0 0.0
    %976 = vmatprep.subr.mxu0 0.0
    %977 = vmatpush1.msra.mxu0 0.0
    %978 = vmatprep.subr.mxu0 0.0
    %979 = vmatpush1.msra.mxu0 0.0
    %980 = vmatprep.subr.mxu0 0.0
    %981 = vmatpush1.msra.mxu0 0.0
    %982 = vmatprep.subr.mxu0 0.0
    %983 = vmatpush1.msra.mxu0 0.0
    %984 = vmatprep.subr.mxu0 0.0
    %985 = vmatpush1.msra.mxu0 0.0
    %986 = vmatprep.subr.mxu0 0.0
    %987 = vmatpush1.msra.mxu0 0.0
    %988 = vmatprep.subr.mxu0 0.0
    %989 = vmatpush1.msra.mxu0 0.0
    %990 = vmatprep.subr.mxu0 0.0
    %991 = vmatpush1.msra.mxu0 0.0
    %992 = vmatprep.subr.mxu0 0.0
    %993 = vmatpush1.msra.mxu0 0.0
    %994 = vmatprep.subr.mxu0 0.0
    %995 = vmatpush1.msra.mxu0 0.0
    %996 = vmatprep.subr.mxu0 0.0
    %997 = vmatpush1.msra.mxu0 0.0
    %998 = vmatprep.subr.mxu0 0.0
    %999 = vmatpush1.msra.mxu0 0.0
    %1000 = vmatprep.subr.mxu0 0.0
    %1001 = vmatpush1.msra.mxu0 0.0
    %1002 = vmatprep.subr.mxu0 0.0
    %1003 = vmatpush1.msra.mxu0 0.0
    %1004 = vmatprep.subr.mxu0 0.0
    %1005 = vmatpush1.msra.mxu0 0.0
    %1006 = vmatprep.subr.mxu0 0.0
    %1007 = vmatpush1.msra.mxu0 0.0
    %1008 = vmatprep.subr.mxu0 0.0
    %1009 = vmatpush1.msra.mxu0 0.0
    %1010 = vmatprep.mubr.f32.mxu0 0.0
    %1011 = vmatmul.mubr.f32.gmra.mrb[0].mxu0 %v941
    %v1012 = vpop.f32.mrb[0].mxu0
    %v1013 = vadd.f32 0.0, %v1012
    %v1014 = vpop.f32.mrb[0].mxu0
    %1015 = vmatprep.mubr.f32.mxu0 0.0
    %1016 = vmatmul.mubr.f32.gmra.mrb[0].mxu0 %v944
    %v1017 = vpop.f32.mrb[0].mxu0
    %v1018 = vadd.f32 0.0, %v1017
    %v1019 = vpop.f32.mrb[0].mxu0
    %1020 = vdwg.mxu0
    %v1022 = vsel %vm382, %v932, 0
    %v1025 = vsel %vm382, %v933, 0
    %1027 = vmatprep.subr.mxu0 0.0
    %1028 = vmatpush1.msra.mxu0 %v359
    %1029 = vmatprep.subr.mxu0 0.0
    %1030 = vmatpush1.msra.mxu0 %v361
    %1031 = vmatprep.subr.mxu0 0.0
    %1032 = vmatpush1.msra.mxu0 0.0
    %1033 = vmatprep.subr.mxu0 0.0
    %1034 = vmatpush1.msra.mxu0 0.0
    %1035 = vmatprep.subr.mxu0 0.0
    %1036 = vmatpush1.msra.mxu0 0.0
    %1037 = vmatprep.subr.mxu0 0.0
    %1038 = vmatpush1.msra.mxu0 0.0
    %1039 = vmatprep.subr.mxu0 0.0
    %1040 = vmatpush1.msra.mxu0 0.0
    %1041 = vmatprep.subr.mxu0 0.0
    %1042 = vmatpush1.msra.mxu0 0.0
    %1043 = vmatprep.subr.mxu0 0.0
    %1044 = vmatpush1.msra.mxu0 0.0
    %1045 = vmatprep.subr.mxu0 0.0
    %1046 = vmatpush1.msra.mxu0 0.0
    %1047 = vmatprep.subr.mxu0 0.0
    %1048 = vmatpush1.msra.mxu0 0.0
    %1049 = vmatprep.subr.mxu0 0.0
    %1050 = vmatpush1.msra.mxu0 0.0
    %1051 = vmatprep.subr.mxu0 0.0
    %1052 = vmatpush1.msra.mxu0 0.0
    %1053 = vmatprep.subr.mxu0 0.0
    %1054 = vmatpush1.msra.mxu0 0.0
    %1055 = vmatprep.subr.mxu0 0.0
    %1056 = vmatpush1.msra.mxu0 0.0
    %1057 = vmatprep.subr.mxu0 0.0
    %1058 = vmatpush1.msra.mxu0 0.0
    %1059 = vmatprep.subr.mxu0 0.0
    %1060 = vmatpush1.msra.mxu0 0.0
    %1061 = vmatprep.subr.mxu0 0.0
    %1062 = vmatpush1.msra.mxu0 0.0
    %1063 = vmatprep.subr.mxu0 0.0
    %1064 = vmatpush1.msra.mxu0 0.0
    %1065 = vmatprep.subr.mxu0 0.0
    %1066 = vmatpush1.msra.mxu0 0.0
    %1067 = vmatprep.subr.mxu0 0.0
    %1068 = vmatpush1.msra.mxu0 0.0
    %1069 = vmatprep.subr.mxu0 0.0
    %1070 = vmatpush1.msra.mxu0 0.0
    %1071 = vmatprep.subr.mxu0 0.0
    %1072 = vmatpush1.msra.mxu0 0.0
    %1073 = vmatprep.subr.mxu0 0.0
    %1074 = vmatpush1.msra.mxu0 0.0
    %1075 = vmatprep.subr.mxu0 0.0
    %1076 = vmatpush1.msra.mxu0 0.0
    %1077 = vmatprep.subr.mxu0 0.0
    %1078 = vmatpush1.msra.mxu0 0.0
    %1079 = vmatprep.subr.mxu0 0.0
    %1080 = vmatpush1.msra.mxu0 0.0
    %1081 = vmatprep.subr.mxu0 0.0
    %1082 = vmatpush1.msra.mxu0 0.0
    %1083 = vmatprep.subr.mxu0 0.0
    %1084 = vmatpush1.msra.mxu0 0.0
    %1085 = vmatprep.subr.mxu0 0.0
    %1086 = vmatpush1.msra.mxu0 0.0
    %1087 = vmatprep.subr.mxu0 0.0
    %1088 = vmatpush1.msra.mxu0 0.0
    %1089 = vmatprep.subr.mxu0 0.0
    %1090 = vmatpush1.msra.mxu0 0.0
    %1091 = vmatprep.mubr.f32.mxu0 0.0
    %1092 = vmatmul.mubr.f32.gmra.mrb[0].mxu0 %v1022
    %v1093 = vpop.f32.mrb[0].mxu0
    %v1094 = vadd.f32 0.0, %v1093
    %v1095 = vpop.f32.mrb[0].mxu0
    %1096 = vmatprep.mubr.f32.mxu0 0.0
    %1097 = vmatmul.mubr.f32.gmra.mrb[0].mxu0 %v1025
    %v1098 = vpop.f32.mrb[0].mxu0
    %v1099 = vadd.f32 0.0, %v1098
    %v1100 = vpop.f32.mrb[0].mxu0
    %1101 = vdwg.mxu0
    %v1103 = vsel %vm382, %v934, 0
    %v1106 = vsel %vm382, %v935, 0
    %1108 = vmatprep.subr.mxu0 0.0
    %1109 = vmatpush1.msra.mxu0 %v365
    %1110 = vmatprep.subr.mxu0 0.0
    %1111 = vmatpush1.msra.mxu0 %v367
    %1112 = vmatprep.subr.mxu0 0.0
    %1113 = vmatpush1.msra.mxu0 0.0
    %1114 = vmatprep.subr.mxu0 0.0
    %1115 = vmatpush1.msra.mxu0 0.0
    %1116 = vmatprep.subr.mxu0 0.0
    %1117 = vmatpush1.msra.mxu0 0.0
    %1118 = vmatprep.subr.mxu0 0.0
    %1119 = vmatpush1.msra.mxu0 0.0
    %1120 = vmatprep.subr.mxu0 0.0
    %1121 = vmatpush1.msra.mxu0 0.0
    %1122 = vmatprep.subr.mxu0 0.0
    %1123 = vmatpush1.msra.mxu0 0.0
    %1124 = vmatprep.subr.mxu0 0.0
    %1125 = vmatpush1.msra.mxu0 0.0
    %1126 = vmatprep.subr.mxu0 0.0
    %1127 = vmatpush1.msra.mxu0 0.0
    %1128 = vmatprep.subr.mxu0 0.0
    %1129 = vmatpush1.msra.mxu0 0.0
    %1130 = vmatprep.subr.mxu0 0.0
    %1131 = vmatpush1.msra.mxu0 0.0
    %1132 = vmatprep.subr.mxu0 0.0
    %1133 = vmatpush1.msra.mxu0 0.0
    %1134 = vmatprep.subr.mxu0 0.0
    %1135 = vmatpush1.msra.mxu0 0.0
    %1136 = vmatprep.subr.mxu0 0.0
    %1137 = vmatpush1.msra.mxu0 0.0
    %1138 = vmatprep.subr.mxu0 0.0
    %1139 = vmatpush1.msra.mxu0 0.0
    %1140 = vmatprep.subr.mxu0 0.0
    %1141 = vmatpush1.msra.mxu0 0.0
    %1142 = vmatprep.subr.mxu0 0.0
    %1143 = vmatpush1.msra.mxu0 0.0
    %1144 = vmatprep.subr.mxu0 0.0
    %1145 = vmatpush1.msra.mxu0 0.0
    %1146 = vmatprep.subr.mxu0 0.0
    %1147 = vmatpush1.msra.mxu0 0.0
    %1148 = vmatprep.subr.mxu0 0.0
    %1149 = vmatpush1.msra.mxu0 0.0
    %1150 = vmatprep.subr.mxu0 0.0
    %1151 = vmatpush1.msra.mxu0 0.0
    %1152 = vmatprep.subr.mxu0 0.0
    %1153 = vmatpush1.msra.mxu0 0.0
    %1154 = vmatprep.subr.mxu0 0.0
    %1155 = vmatpush1.msra.mxu0 0.0
    %1156 = vmatprep.subr.mxu0 0.0
    %1157 = vmatpush1.msra.mxu0 0.0
    %1158 = vmatprep.subr.mxu0 0.0
    %1159 = vmatpush1.msra.mxu0 0.0
    %1160 = vmatprep.subr.mxu0 0.0
    %1161 = vmatpush1.msra.mxu0 0.0
    %1162 = vmatprep.subr.mxu0 0.0
    %1163 = vmatpush1.msra.mxu0 0.0
    %1164 = vmatprep.subr.mxu0 0.0
    %1165 = vmatpush1.msra.mxu0 0.0
    %1166 = vmatprep.subr.mxu0 0.0
    %1167 = vmatpush1.msra.mxu0 0.0
    %1168 = vmatprep.subr.mxu0 0.0
    %1169 = vmatpush1.msra.mxu0 0.0
    %1170 = vmatprep.subr.mxu0 0.0
    %1171 = vmatpush1.msra.mxu0 0.0
    %1172 = vmatprep.mubr.f32.mxu0 0.0
    %1173 = vmatmul.mubr.f32.gmra.mrb[0].mxu0 %v1103
    %v1174 = vpop.f32.mrb[0].mxu0
    %v1175 = vadd.f32 0.0, %v1174
    %v1176 = vpop.f32.mrb[0].mxu0
    %1177 = vmatprep.mubr.f32.mxu0 0.0
    %1178 = vmatmul.mubr.f32.gmra.mrb[0].mxu0 %v1106
    %v1179 = vpop.f32.mrb[0].mxu0
    %v1180 = vadd.f32 0.0, %v1179
    %v1181 = vpop.f32.mrb[0].mxu0
    %1182 = vdwg.mxu0
    %v1184 = vsel %vm382, %v936, 0
    %v1187 = vsel %vm382, %v937, 0
    %1189 = vmatprep.subr.mxu0 0.0
    %1190 = vmatpush1.msra.mxu0 %v371
    %1191 = vmatprep.subr.mxu0 0.0
    %1192 = vmatpush1.msra.mxu0 %v373
    %1193 = vmatprep.subr.mxu0 0.0
    %1194 = vmatpush1.msra.mxu0 0.0
    %1195 = vmatprep.subr.mxu0 0.0
    %1196 = vmatpush1.msra.mxu0 0.0
    %1197 = vmatprep.subr.mxu0 0.0
    %1198 = vmatpush1.msra.mxu0 0.0
    %1199 = vmatprep.subr.mxu0 0.0
    %1200 = vmatpush1.msra.mxu0 0.0
    %1201 = vmatprep.subr.mxu0 0.0
    %1202 = vmatpush1.msra.mxu0 0.0
    %1203 = vmatprep.subr.mxu0 0.0
    %1204 = vmatpush1.msra.mxu0 0.0
    %1205 = vmatprep.subr.mxu0 0.0
    %1206 = vmatpush1.msra.mxu0 0.0
    %1207 = vmatprep.subr.mxu0 0.0
    %1208 = vmatpush1.msra.mxu0 0.0
    %1209 = vmatprep.subr.mxu0 0.0
    %1210 = vmatpush1.msra.mxu0 0.0
    %1211 = vmatprep.subr.mxu0 0.0
    %1212 = vmatpush1.msra.mxu0 0.0
    %1213 = vmatprep.subr.mxu0 0.0
    %1214 = vmatpush1.msra.mxu0 0.0
    %1215 = vmatprep.subr.mxu0 0.0
    %1216 = vmatpush1.msra.mxu0 0.0
    %1217 = vmatprep.subr.mxu0 0.0
    %1218 = vmatpush1.msra.mxu0 0.0
    %1219 = vmatprep.subr.mxu0 0.0
    %1220 = vmatpush1.msra.mxu0 0.0
    %1221 = vmatprep.subr.mxu0 0.0
    %1222 = vmatpush1.msra.mxu0 0.0
    %1223 = vmatprep.subr.mxu0 0.0
    %1224 = vmatpush1.msra.mxu0 0.0
    %1225 = vmatprep.subr.mxu0 0.0
    %1226 = vmatpush1.msra.mxu0 0.0
    %1227 = vmatprep.subr.mxu0 0.0
    %1228 = vmatpush1.msra.mxu0 0.0
    %1229 = vmatprep.subr.mxu0 0.0
    %1230 = vmatpush1.msra.mxu0 0.0
    %1231 = vmatprep.subr.mxu0 0.0
    %1232 = vmatpush1.msra.mxu0 0.0
    %1233 = vmatprep.subr.mxu0 0.0
    %1234 = vmatpush1.msra.mxu0 0.0
    %1235 = vmatprep.subr.mxu0 0.0
    %1236 = vmatpush1.msra.mxu0 0.0
    %1237 = vmatprep.subr.mxu0 0.0
    %1238 = vmatpush1.msra.mxu0 0.0
    %1239 = vmatprep.subr.mxu0 0.0
    %1240 = vmatpush1.msra.mxu0 0.0
    %1241 = vmatprep.subr.mxu0 0.0
    %1242 = vmatpush1.msra.mxu0 0.0
    %1243 = vmatprep.subr.mxu0 0.0
    %1244 = vmatpush1.msra.mxu0 0.0
    %1245 = vmatprep.subr.mxu0 0.0
    %1246 = vmatpush1.msra.mxu0 0.0
    %1247 = vmatprep.subr.mxu0 0.0
    %1248 = vmatpush1.msra.mxu0 0.0
    %1249 = vmatprep.subr.mxu0 0.0
    %1250 = vmatpush1.msra.mxu0 0.0
    %1251 = vmatprep.subr.mxu0 0.0
    %1252 = vmatpush1.msra.mxu0 0.0
    %1253 = vmatprep.mubr.f32.mxu0 0.0
    %1254 = vmatmul.mubr.f32.gmra.mrb[0].mxu0 %v1184
    %v1255 = vpop.f32.mrb[0].mxu0
    %v1256 = vadd.f32 0.0, %v1255
    %v1257 = vpop.f32.mrb[0].mxu0
    %1258 = vmatprep.mubr.f32.mxu0 0.0
    %1259 = vmatmul.mubr.f32.gmra.mrb[0].mxu0 %v1187
    %v1260 = vpop.f32.mrb[0].mxu0
    %v1261 = vadd.f32 0.0, %v1260
    %v1262 = vpop.f32.mrb[0].mxu0
    %1263 = vdwg.mxu0
    %v1265 = vsel %vm382, %v938, 0
    %v1268 = vsel %vm382, %v939, 0
    %1270 = vmatprep.subr.mxu0 0.0
    %1271 = vmatpush1.msra.mxu0 %v377
    %1272 = vmatprep.subr.mxu0 0.0
    %1273 = vmatpush1.msra.mxu0 %v379
    %1274 = vmatprep.subr.mxu0 0.0
    %1275 = vmatpush1.msra.mxu0 0.0
    %1276 = vmatprep.subr.mxu0 0.0
    %1277 = vmatpush1.msra.mxu0 0.0
    %1278 = vmatprep.subr.mxu0 0.0
    %1279 = vmatpush1.msra.mxu0 0.0
    %1280 = vmatprep.subr.mxu0 0.0
    %1281 = vmatpush1.msra.mxu0 0.0
    %1282 = vmatprep.subr.mxu0 0.0
    %1283 = vmatpush1.msra.mxu0 0.0
    %1284 = vmatprep.subr.mxu0 0.0
    %1285 = vmatpush1.msra.mxu0 0.0
    %1286 = vmatprep.subr.mxu0 0.0
    %1287 = vmatpush1.msra.mxu0 0.0
    %1288 = vmatprep.subr.mxu0 0.0
    %1289 = vmatpush1.msra.mxu0 0.0
    %1290 = vmatprep.subr.mxu0 0.0
    %1291 = vmatpush1.msra.mxu0 0.0
    %1292 = vmatprep.subr.mxu0 0.0
    %1293 = vmatpush1.msra.mxu0 0.0
    %1294 = vmatprep.subr.mxu0 0.0
    %1295 = vmatpush1.msra.mxu0 0.0
    %1296 = vmatprep.subr.mxu0 0.0
    %1297 = vmatpush1.msra.mxu0 0.0
    %1298 = vmatprep.subr.mxu0 0.0
    %1299 = vmatpush1.msra.mxu0 0.0
    %1300 = vmatprep.subr.mxu0 0.0
    %1301 = vmatpush1.msra.mxu0 0.0
    %1302 = vmatprep.subr.mxu0 0.0
    %1303 = vmatpush1.msra.mxu0 0.0
    %1304 = vmatprep.subr.mxu0 0.0
    %1305 = vmatpush1.msra.mxu0 0.0
    %1306 = vmatprep.subr.mxu0 0.0
    %1307 = vmatpush1.msra.mxu0 0.0
    %1308 = vmatprep.subr.mxu0 0.0
    %1309 = vmatpush1.msra.mxu0 0.0
    %1310 = vmatprep.subr.mxu0 0.0
    %1311 = vmatpush1.msra.mxu0 0.0
    %1312 = vmatprep.subr.mxu0 0.0
    %1313 = vmatpush1.msra.mxu0 0.0
    %1314 = vmatprep.subr.mxu0 0.0
    %1315 = vmatpush1.msra.mxu0 0.0
    %1316 = vmatprep.subr.mxu0 0.0
    %1317 = vmatpush1.msra.mxu0 0.0
    %1318 = vmatprep.subr.mxu0 0.0
    %1319 = vmatpush1.msra.mxu0 0.0
    %1320 = vmatprep.subr.mxu0 0.0
    %1321 = vmatpush1.msra.mxu0 0.0
    %1322 = vmatprep.subr.mxu0 0.0
    %1323 = vmatpush1.msra.mxu0 0.0
    %1324 = vmatprep.subr.mxu0 0.0
    %1325 = vmatpush1.msra.mxu0 0.0
    %1326 = vmatprep.subr.mxu0 0.0
    %1327 = vmatpush1.msra.mxu0 0.0
    %1328 = vmatprep.subr.mxu0 0.0
    %1329 = vmatpush1.msra.mxu0 0.0
    %1330 = vmatprep.subr.mxu0 0.0
    %1331 = vmatpush1.msra.mxu0 0.0
    %1332 = vmatprep.subr.mxu0 0.0
    %1333 = vmatpush1.msra.mxu0 0.0
    %1334 = vmatprep.mubr.f32.mxu0 0.0
    %1335 = vmatmul.mubr.f32.gmra.mrb[0].mxu0 %v1265
    %v1336 = vpop.f32.mrb[0].mxu0
    %v1337 = vadd.f32 0.0, %v1336
    %v1338 = vpop.f32.mrb[0].mxu0
    %1339 = vmatprep.mubr.f32.mxu0 0.0
    %1340 = vmatmul.mubr.f32.gmra.mrb[0].mxu0 %v1268
    %v1341 = vpop.f32.mrb[0].mxu0
    %v1342 = vadd.f32 0.0, %v1341
    %v1343 = vpop.f32.mrb[0].mxu0
    %1344 = vdwg.mxu0
    %v1345 = vsel %vm382, %v1013, 0.0
    %v1346 = vsel %vm382, %v1094, 0.0
    %v1347 = vadd.f32 %v1345, %v1346
    %v1348 = vsel %vm382, %v1175, 0.0
    %v1349 = vadd.f32 %v1347, %v1348
    %v1350 = vsel %vm382, %v1256, 0.0
    %v1351 = vadd.f32 %v1349, %v1350
    %v1352 = vsel %vm382, %v1337, 0.0
    %v1353 = vadd.f32 %v1351, %v1352
    %v1354 = vsel %vm382, %v1018, 0.0
    %v1355 = vsel %vm382, %v1099, 0.0
    %v1356 = vadd.f32 %v1354, %v1355
    %v1357 = vsel %vm382, %v1180, 0.0
    %v1358 = vadd.f32 %v1356, %v1357
    %v1359 = vsel %vm382, %v1261, 0.0
    %v1360 = vadd.f32 %v1358, %v1359
    %v1361 = vsel %vm382, %v1342, 0.0
    %v1362 = vadd.f32 %v1360, %v1361
    %v1363 = vadd.f32 %v1353, %v312
    %v1364 = vadd.f32 %v1362, %v318
    %v1365 = vlaneseq
    %v1366 = vshrl.u32 %v1365, 7
    %v1367 = vsub.s32 0, %v1366
    %v1368 = vrot.slane %v30, %v1367
    %v1370 = vsel %vm382, %v1363, 0
    %v1373 = vsel %vm382, %v1364, 0
    %1375 = vmatprep.subr.mxu0 0.0
    %1376 = vmatpush1.msra.mxu0 %v28
    %1377 = vmatprep.subr.mxu0 0.0
    %1378 = vmatpush1.msra.mxu0 %v29
    %1379 = vmatprep.subr.mxu0 0.0
    %1380 = vmatpush1.msra.mxu0 0.0
    %1381 = vmatprep.subr.mxu0 0.0
    %1382 = vmatpush1.msra.mxu0 0.0
    %1383 = vmatprep.subr.mxu0 0.0
    %1384 = vmatpush1.msra.mxu0 0.0
    %1385 = vmatprep.subr.mxu0 0.0
    %1386 = vmatpush1.msra.mxu0 0.0
    %1387 = vmatprep.subr.mxu0 0.0
    %1388 = vmatpush1.msra.mxu0 0.0
    %1389 = vmatprep.subr.mxu0 0.0
    %1390 = vmatpush1.msra.mxu0 0.0
    %1391 = vmatprep.subr.mxu0 0.0
    %1392 = vmatpush1.msra.mxu0 0.0
    %1393 = vmatprep.subr.mxu0 0.0
    %1394 = vmatpush1.msra.mxu0 0.0
    %1395 = vmatprep.subr.mxu0 0.0
    %1396 = vmatpush1.msra.mxu0 0.0
    %1397 = vmatprep.subr.mxu0 0.0
    %1398 = vmatpush1.msra.mxu0 0.0
    %1399 = vmatprep.subr.mxu0 0.0
    %1400 = vmatpush1.msra.mxu0 0.0
    %1401 = vmatprep.subr.mxu0 0.0
    %1402 = vmatpush1.msra.mxu0 0.0
    %1403 = vmatprep.subr.mxu0 0.0
    %1404 = vmatpush1.msra.mxu0 0.0
    %1405 = vmatprep.subr.mxu0 0.0
    %1406 = vmatpush1.msra.mxu0 0.0
    %1407 = vmatprep.subr.mxu0 0.0
    %1408 = vmatpush1.msra.mxu0 0.0
    %1409 = vmatprep.subr.mxu0 0.0
    %1410 = vmatpush1.msra.mxu0 0.0
    %1411 = vmatprep.subr.mxu0 0.0
    %1412 = vmatpush1.msra.mxu0 0.0
    %1413 = vmatprep.subr.mxu0 0.0
    %1414 = vmatpush1.msra.mxu0 0.0
    %1415 = vmatprep.subr.mxu0 0.0
    %1416 = vmatpush1.msra.mxu0 0.0
    %1417 = vmatprep.subr.mxu0 0.0
    %1418 = vmatpush1.msra.mxu0 0.0
    %1419 = vmatprep.subr.mxu0 0.0
    %1420 = vmatpush1.msra.mxu0 0.0
    %1421 = vmatprep.subr.mxu0 0.0
    %1422 = vmatpush1.msra.mxu0 0.0
    %1423 = vmatprep.subr.mxu0 0.0
    %1424 = vmatpush1.msra.mxu0 0.0
    %1425 = vmatprep.subr.mxu0 0.0
    %1426 = vmatpush1.msra.mxu0 0.0
    %1427 = vmatprep.subr.mxu0 0.0
    %1428 = vmatpush1.msra.mxu0 0.0
    %1429 = vmatprep.subr.mxu0 0.0
    %1430 = vmatpush1.msra.mxu0 0.0
    %1431 = vmatprep.subr.mxu0 0.0
    %1432 = vmatpush1.msra.mxu0 0.0
    %1433 = vmatprep.subr.mxu0 0.0
    %1434 = vmatpush1.msra.mxu0 0.0
    %1435 = vmatprep.subr.mxu0 0.0
    %1436 = vmatpush1.msra.mxu0 0.0
    %1437 = vmatprep.subr.mxu0 0.0
    %1438 = vmatpush1.msra.mxu0 0.0
    %1439 = vmatprep.mubr.f32.mxu0 0.0
    %1440 = vmatmul.mubr.f32.gmra.mrb[0].mxu0 %v1370
    %v1441 = vpop.f32.mrb[0].mxu0
    %v1442 = vadd.f32 %v1368, %v1441
    %v1443 = vpop.f32.mrb[0].mxu0
    %1444 = vmatprep.mubr.f32.mxu0 0.0
    %1445 = vmatmul.mubr.f32.gmra.mrb[0].mxu0 %v1373
    %v1446 = vpop.f32.mrb[0].mxu0
    %v1447 = vadd.f32 %v1368, %v1446
    %v1448 = vpop.f32.mrb[0].mxu0
    %1449 = vdwg.mxu0
    %v1450 = vmax.f32 %v1442, 0.0
    %v1451 = vmax.f32 %v1447, 0.0
    %v1452 = vlaneseq
    %v1453 = vshrl.u32 %v1452, 7
    %v1454 = vsub.s32 1, %v1453
    %v1455 = vrot.slane %v30, %v1454
    %v1456 = vmul.f32 %v1450, %v1455
    %v1457 = vmul.f32 %v1451, %v1455
    %v1458 = vlaneseq
    %v1459 = vshrl.u32 %v1458, 7
    %v1460 = vsub.s32 2, %v1459
    %v1461 = vrot.slane %v30, %v1460
    %v1462 = vadd.f32 %v1456, %v1461
    %v1463 = vadd.f32 %v1457, %v1461
    %1464 = vst.msk [vmem:[#allocation2] sm:$0xff] %vm382, %v1462
    %1465 = vst.msk [vmem:[#allocation2 + $0x8] sm:$0xff] %vm382, %v1463
    // Predicated region
    $region18: #{graph_transformer.1} parent=1 // pred_check
      _
    $region19: #{graph_transformer.1} parent=1 // pred_check_branch
      %1467 = sbr.rel (0) target = $region21
    $region20: #{graph_transformer.1} parent=1 // pred_region
      %s1469 = ssub.s32 256, 256
      %1470 = vsyncadd [#allocation3], %s1469
      %s1471 = sshll.u32 [#allocation2], 4
      %s1472 = int_to_ptr.vmem [resolvable:$true] %s1471
      %1477 = dma.vmem_to_hbm [thread:$0]  %s1472, 256, %s4, [#allocation3], 128, 128, 8
    $region21: #{graph_transformer.1} parent=1 // pred_fallthru
      _
    // Predicated region
    $region22: #{graph_transformer.1} parent=1 // pred_check
      _
    $region23: #{graph_transformer.1} parent=1 // pred_check_branch
      %1479 = sbr.rel (0) target = $region25
    $region24: #{graph_transformer.1} parent=1 // pred_region
      %1480 = dma.done [#allocation3], 256
    $region25: #{graph_transformer.1} parent=1 // pred_fallthru
      _
    %1481 = vsyncpa [#allocation3], 1

</llo_original>
